<compile_context>
chip_gen: v7x
topology: tpu7x:2x2x1
jax: 0.10.0
libtpu: 0.0.40
codegen_flags: <defaults>
</compile_context>

<pallas_src>
import functools

import jax
import jax.numpy as jnp
from jax.experimental import pallas as pl
from jax.experimental.pallas import tpu as pltpu


# ---------------------------------------------------------------------------
# Fused kernel: all layers + FC.  No grid -> single invocation, everything VMEM.
# ---------------------------------------------------------------------------
def _fused_rnn_kernel(num_layers, seq_len, batch, x_ref, *refs):
    """Kernel refs (in order):
         x_ref                    : (T*B, Din)  time-major flattened input
         per layer (3 refs each)  : w_ih_T (d_in,H), w_hh_T (H,H), bias (1,H)
         fc_w_T                   : (H, C)
         fc_b                     : (1, C)
         out_ref  (output)        : (B, C)
         act_ref  (VMEM scratch)  : (T*B, H)  inter-layer activations
    """
    layer_refs = refs[: 3 * num_layers]
    fcw_ref, fcb_ref, out_ref, act_ref = refs[3 * num_layers:]

    T, B = seq_len, batch
    H = act_ref.shape[-1]

    h = None
    for layer in range(num_layers):
        wih = layer_refs[3 * layer][...]        # (d_in, H)   pre-transposed
        whh = layer_refs[3 * layer + 1][...]    # (H, H)      pre-transposed
        bias = layer_refs[3 * layer + 2][...]   # (1, H)      b_ih + b_hh

        # Hoisted input projection for ALL timesteps at once; bias broadcast
        # happens exactly once per layer here.
        src = x_ref[...] if layer == 0 else act_ref[...]
        pre_all = jnp.dot(src.astype(jnp.float32), wih,
                          preferred_element_type=jnp.float32) + bias   # (T*B, H)

        # Serial recurrence: only h @ W_hh is on the critical path.
        h = jnp.zeros((B, H), jnp.float32)
        for t in range(T):  # static, small -> fully unrolled at trace time
            h = jnp.tanh(pre_all[t * B:(t + 1) * B, :]
                         + jnp.dot(h, whh, preferred_element_type=jnp.float32))
            if layer < num_layers - 1:
                act_ref[t * B:(t + 1) * B, :] = h   # feed next layer (VMEM)
        # h == last-timestep hidden state of this layer.

    # Final Linear on the last timestep only (== fc(out)[:, -1, :]).
    logits = (jnp.dot(h, fcw_ref[...], preferred_element_type=jnp.float32)
              + fcb_ref[...])
    out_ref[...] = logits.astype(out_ref.dtype)


# ---------------------------------------------------------------------------
# Wrapper: pre-transpose weights, pre-sum biases, flatten input time-major.
# ---------------------------------------------------------------------------
@functools.partial(jax.jit, static_argnames=("num_layers",))
def vanilla_rnn_forward(x, params, num_layers):
    B, T, Din = x.shape
    H = params["rnn"][0][1].shape[0]          # W_hh is (H, H)
    C = params["fc_w"].shape[0]

    # Time-major flattened input: row (t*B + b) = x[b, t, :].
    x_flat = jnp.transpose(x, (1, 0, 2)).reshape(T * B, Din)

    inputs = [x_flat]
    for layer in range(num_layers):
        w_ih, w_hh, b_ih, b_hh = params["rnn"][layer]
        inputs += [
            w_ih.T.astype(jnp.float32),                       # (d_in, H)
            w_hh.T.astype(jnp.float32),                       # (H, H)
            (b_ih + b_hh).reshape(1, H).astype(jnp.float32),  # (1, H)
        ]
    inputs += [
        params["fc_w"].T.astype(jnp.float32),                 # (H, C)
        params["fc_b"].reshape(1, C).astype(jnp.float32),     # (1, C)
    ]

    kernel = functools.partial(_fused_rnn_kernel, num_layers, T, B)
    return pl.pallas_call(
        kernel,
        out_shape=jax.ShapeDtypeStruct((B, C), x.dtype),
        scratch_shapes=[pltpu.VMEM((T * B, H), jnp.float32)],
    )(*inputs)


# ---------------------------------------------------------------------------
# Init + pure-JAX reference (torch.nn.RNN semantics).
# ---------------------------------------------------------------------------
def init_params(key, input_size, hidden_size, num_layers, num_classes):
    """Deterministic init mimicking PyTorch U(-1/sqrt(H), 1/sqrt(H))."""
    k = 1.0 / jnp.sqrt(hidden_size)
    rnn_params = []
    for layer in range(num_layers):
        d_in = input_size if layer == 0 else hidden_size
        key, k1, k2, k3, k4 = jax.random.split(key, 5)
        w_ih = jax.random.uniform(k1, (hidden_size, d_in), jnp.float32, -k, k)
        w_hh = jax.random.uniform(k2, (hidden_size, hidden_size), jnp.float32, -k, k)
        b_ih = jax.random.uniform(k3, (hidden_size,), jnp.float32, -k, k)
        b_hh = jax.random.uniform(k4, (hidden_size,), jnp.float32, -k, k)
        rnn_params.append((w_ih, w_hh, b_ih, b_hh))
    key, k5, k6 = jax.random.split(key, 3)
    fc_w = jax.random.uniform(k5, (num_classes, hidden_size), jnp.float32, -k, k)
    fc_b = jax.random.uniform(k6, (num_classes,), jnp.float32, -k, k)
    return {"rnn": rnn_params, "fc_w": fc_w, "fc_b": fc_b}


def reference_forward(x, params, num_layers):
    h = x
    for layer in range(num_layers):
        w_ih, w_hh, b_ih, b_hh = params["rnn"][layer]
        B = h.shape[0]
        state = jnp.zeros((B, w_ih.shape[0]), jnp.float32)
        outs = []
        for t in range(h.shape[1]):
            state = jnp.tanh(h[:, t, :] @ w_ih.T + state @ w_hh.T + b_ih + b_hh)
            outs.append(state)
        h = jnp.stack(outs, axis=1)
    out = h @ params["fc_w"].T + params["fc_b"]
    return out[:, -1, :]


if __name__ == "__main__":
    # Small shapes consistent with the module's forward.
    B, T, INPUT, HIDDEN, LAYERS, CLASSES = 2, 8, 16, 32, 2, 10

    key = jax.random.PRNGKey(0)
    key, kx = jax.random.split(key)
    x = jax.random.normal(kx, (B, T, INPUT), jnp.float32)
    params = init_params(key, INPUT, HIDDEN, LAYERS, CLASSES)

    out = vanilla_rnn_forward(x, params, LAYERS)
    out = jax.block_until_ready(out)
    assert out.shape == (B, CLASSES), out.shape

    ref = reference_forward(x, params, LAYERS)
    err = jnp.max(jnp.abs(out - ref))
    assert jnp.allclose(out, ref, atol=1e-3, rtol=1e-3), f"max abs err {err}"

    print("KERNEL_OK")
</pallas_src>

<mosaic_0001>
module attributes {stable_mosaic.version = 11 : i64} {
  func.func @_fused_rnn_kernel(%arg0: memref<16x16xf32, #tpu.memory_space<vmem>>, %arg1: memref<16x32xf32, #tpu.memory_space<vmem>>, %arg2: memref<32x32xf32, #tpu.memory_space<vmem>>, %arg3: memref<1x32xf32, #tpu.memory_space<vmem>>, %arg4: memref<32x32xf32, #tpu.memory_space<vmem>>, %arg5: memref<32x32xf32, #tpu.memory_space<vmem>>, %arg6: memref<1x32xf32, #tpu.memory_space<vmem>>, %arg7: memref<32x10xf32, #tpu.memory_space<vmem>>, %arg8: memref<1x10xf32, #tpu.memory_space<vmem>>, %arg9: memref<2x10xf32, #tpu.memory_space<vmem>>, %arg10: memref<16x32xf32, #tpu.memory_space<vmem>>) attributes {dimension_semantics = [], scalar_prefetch = 0 : i64, scratch_operands = 1 : i64, tpu.core_type = #tpu.core_type<tc>} {
    %c0 = arith.constant 0 : index
    %c0_0 = arith.constant 0 : index
    %0 = vector.load %arg1[%c0, %c0_0] : memref<16x32xf32, #tpu.memory_space<vmem>>, vector<16x32xf32>
    %c0_1 = arith.constant 0 : index
    %c0_2 = arith.constant 0 : index
    %1 = vector.load %arg2[%c0_1, %c0_2] : memref<32x32xf32, #tpu.memory_space<vmem>>, vector<32x32xf32>
    %c0_3 = arith.constant 0 : index
    %c0_4 = arith.constant 0 : index
    %2 = vector.load %arg3[%c0_3, %c0_4] : memref<1x32xf32, #tpu.memory_space<vmem>>, vector<1x32xf32>
    %c0_5 = arith.constant 0 : index
    %c0_6 = arith.constant 0 : index
    %3 = vector.load %arg0[%c0_5, %c0_6] : memref<16x16xf32, #tpu.memory_space<vmem>>, vector<16x16xf32>
    %cst = arith.constant dense<0.000000e+00> : vector<16x32xf32>
    %4 = tpu.matmul %3, %0, %cst {dimension_numbers = #tpu.dot_dimension_numbers<[1], [0], [0], [1], [0, 0, 1, 1], [], []>} : vector<16x16xf32>, vector<16x32xf32>, vector<16x32xf32> -> vector<16x32xf32>
    %5 = vector.broadcast %2 : vector<1x32xf32> to vector<16x32xf32>
    %6 = arith.addf %4, %5 : vector<16x32xf32>
    %cst_7 = arith.constant 0.000000e+00 : f32
    %7 = vector.broadcast %cst_7 : f32 to vector<2x32xf32>
    %8 = vector.extract_strided_slice %6 {offsets = [0, 0], sizes = [2, 32], strides = [1, 1]} : vector<16x32xf32> to vector<2x32xf32>
    %cst_8 = arith.constant dense<0.000000e+00> : vector<2x32xf32>
    %9 = tpu.matmul %7, %1, %cst_8 {dimension_numbers = #tpu.dot_dimension_numbers<[1], [0], [0], [1], [0, 0, 1, 1], [], []>} : vector<2x32xf32>, vector<32x32xf32>, vector<2x32xf32> -> vector<2x32xf32>
    %10 = arith.addf %8, %9 : vector<2x32xf32>
    %11 = math.tanh %10 : vector<2x32xf32>
    %c0_9 = arith.constant 0 : index
    %c0_10 = arith.constant 0 : index
    %12 = vector.load %arg10[%c0_9, %c0_10] : memref<16x32xf32, #tpu.memory_space<vmem>>, vector<2x32xf32>
    tpu.vector_store %arg10[%c0_9, %c0_10], %11 {strides = array<i32>} : memref<16x32xf32, #tpu.memory_space<vmem>>, vector<2x32xf32>,
    %13 = vector.extract_strided_slice %6 {offsets = [2, 0], sizes = [2, 32], strides = [1, 1]} : vector<16x32xf32> to vector<2x32xf32>
    %cst_11 = arith.constant dense<0.000000e+00> : vector<2x32xf32>
    %14 = tpu.matmul %11, %1, %cst_11 {dimension_numbers = #tpu.dot_dimension_numbers<[1], [0], [0], [1], [0, 0, 1, 1], [], []>} : vector<2x32xf32>, vector<32x32xf32>, vector<2x32xf32> -> vector<2x32xf32>
    %15 = arith.addf %13, %14 : vector<2x32xf32>
    %16 = math.tanh %15 : vector<2x32xf32>
    %c2 = arith.constant 2 : index
    %c0_12 = arith.constant 0 : index
    %17 = vector.load %arg10[%c2, %c0_12] : memref<16x32xf32, #tpu.memory_space<vmem>>, vector<2x32xf32>
    tpu.vector_store %arg10[%c2, %c0_12], %16 {strides = array<i32>} : memref<16x32xf32, #tpu.memory_space<vmem>>, vector<2x32xf32>,
    %18 = vector.extract_strided_slice %6 {offsets = [4, 0], sizes = [2, 32], strides = [1, 1]} : vector<16x32xf32> to vector<2x32xf32>
    %cst_13 = arith.constant dense<0.000000e+00> : vector<2x32xf32>
    %19 = tpu.matmul %16, %1, %cst_13 {dimension_numbers = #tpu.dot_dimension_numbers<[1], [0], [0], [1], [0, 0, 1, 1], [], []>} : vector<2x32xf32>, vector<32x32xf32>, vector<2x32xf32> -> vector<2x32xf32>
    %20 = arith.addf %18, %19 : vector<2x32xf32>
    %21 = math.tanh %20 : vector<2x32xf32>
    %c4 = arith.constant 4 : index
    %c0_14 = arith.constant 0 : index
    %22 = vector.load %arg10[%c4, %c0_14] : memref<16x32xf32, #tpu.memory_space<vmem>>, vector<2x32xf32>
    tpu.vector_store %arg10[%c4, %c0_14], %21 {strides = array<i32>} : memref<16x32xf32, #tpu.memory_space<vmem>>, vector<2x32xf32>,
    %23 = vector.extract_strided_slice %6 {offsets = [6, 0], sizes = [2, 32], strides = [1, 1]} : vector<16x32xf32> to vector<2x32xf32>
    %cst_15 = arith.constant dense<0.000000e+00> : vector<2x32xf32>
    %24 = tpu.matmul %21, %1, %cst_15 {dimension_numbers = #tpu.dot_dimension_numbers<[1], [0], [0], [1], [0, 0, 1, 1], [], []>} : vector<2x32xf32>, vector<32x32xf32>, vector<2x32xf32> -> vector<2x32xf32>
    %25 = arith.addf %23, %24 : vector<2x32xf32>
    %26 = math.tanh %25 : vector<2x32xf32>
    %c6 = arith.constant 6 : index
    %c0_16 = arith.constant 0 : index
    %27 = vector.load %arg10[%c6, %c0_16] : memref<16x32xf32, #tpu.memory_space<vmem>>, vector<2x32xf32>
    tpu.vector_store %arg10[%c6, %c0_16], %26 {strides = array<i32>} : memref<16x32xf32, #tpu.memory_space<vmem>>, vector<2x32xf32>,
    %28 = vector.extract_strided_slice %6 {offsets = [8, 0], sizes = [2, 32], strides = [1, 1]} : vector<16x32xf32> to vector<2x32xf32>
    %cst_17 = arith.constant dense<0.000000e+00> : vector<2x32xf32>
    %29 = tpu.matmul %26, %1, %cst_17 {dimension_numbers = #tpu.dot_dimension_numbers<[1], [0], [0], [1], [0, 0, 1, 1], [], []>} : vector<2x32xf32>, vector<32x32xf32>, vector<2x32xf32> -> vector<2x32xf32>
    %30 = arith.addf %28, %29 : vector<2x32xf32>
    %31 = math.tanh %30 : vector<2x32xf32>
    %c8 = arith.constant 8 : index
    %c0_18 = arith.constant 0 : index
    %32 = vector.load %arg10[%c8, %c0_18] : memref<16x32xf32, #tpu.memory_space<vmem>>, vector<2x32xf32>
    tpu.vector_store %arg10[%c8, %c0_18], %31 {strides = array<i32>} : memref<16x32xf32, #tpu.memory_space<vmem>>, vector<2x32xf32>,
    %33 = vector.extract_strided_slice %6 {offsets = [10, 0], sizes = [2, 32], strides = [1, 1]} : vector<16x32xf32> to vector<2x32xf32>
    %cst_19 = arith.constant dense<0.000000e+00> : vector<2x32xf32>
    %34 = tpu.matmul %31, %1, %cst_19 {dimension_numbers = #tpu.dot_dimension_numbers<[1], [0], [0], [1], [0, 0, 1, 1], [], []>} : vector<2x32xf32>, vector<32x32xf32>, vector<2x32xf32> -> vector<2x32xf32>
    %35 = arith.addf %33, %34 : vector<2x32xf32>
    %36 = math.tanh %35 : vector<2x32xf32>
    %c10 = arith.constant 10 : index
    %c0_20 = arith.constant 0 : index
    %37 = vector.load %arg10[%c10, %c0_20] : memref<16x32xf32, #tpu.memory_space<vmem>>, vector<2x32xf32>
    tpu.vector_store %arg10[%c10, %c0_20], %36 {strides = array<i32>} : memref<16x32xf32, #tpu.memory_space<vmem>>, vector<2x32xf32>,
    %38 = vector.extract_strided_slice %6 {offsets = [12, 0], sizes = [2, 32], strides = [1, 1]} : vector<16x32xf32> to vector<2x32xf32>
    %cst_21 = arith.constant dense<0.000000e+00> : vector<2x32xf32>
    %39 = tpu.matmul %36, %1, %cst_21 {dimension_numbers = #tpu.dot_dimension_numbers<[1], [0], [0], [1], [0, 0, 1, 1], [], []>} : vector<2x32xf32>, vector<32x32xf32>, vector<2x32xf32> -> vector<2x32xf32>
    %40 = arith.addf %38, %39 : vector<2x32xf32>
    %41 = math.tanh %40 : vector<2x32xf32>
    %c12 = arith.constant 12 : index
    %c0_22 = arith.constant 0 : index
    %42 = vector.load %arg10[%c12, %c0_22] : memref<16x32xf32, #tpu.memory_space<vmem>>, vector<2x32xf32>
    tpu.vector_store %arg10[%c12, %c0_22], %41 {strides = array<i32>} : memref<16x32xf32, #tpu.memory_space<vmem>>, vector<2x32xf32>,
    %43 = vector.extract_strided_slice %6 {offsets = [14, 0], sizes = [2, 32], strides = [1, 1]} : vector<16x32xf32> to vector<2x32xf32>
    %cst_23 = arith.constant dense<0.000000e+00> : vector<2x32xf32>
    %44 = tpu.matmul %41, %1, %cst_23 {dimension_numbers = #tpu.dot_dimension_numbers<[1], [0], [0], [1], [0, 0, 1, 1], [], []>} : vector<2x32xf32>, vector<32x32xf32>, vector<2x32xf32> -> vector<2x32xf32>
    %45 = arith.addf %43, %44 : vector<2x32xf32>
    %46 = math.tanh %45 : vector<2x32xf32>
    %c14 = arith.constant 14 : index
    %c0_24 = arith.constant 0 : index
    %47 = vector.load %arg10[%c14, %c0_24] : memref<16x32xf32, #tpu.memory_space<vmem>>, vector<2x32xf32>
    tpu.vector_store %arg10[%c14, %c0_24], %46 {strides = array<i32>} : memref<16x32xf32, #tpu.memory_space<vmem>>, vector<2x32xf32>,
    %c0_25 = arith.constant 0 : index
    %c0_26 = arith.constant 0 : index
    %48 = vector.load %arg4[%c0_25, %c0_26] : memref<32x32xf32, #tpu.memory_space<vmem>>, vector<32x32xf32>
    %c0_27 = arith.constant 0 : index
    %c0_28 = arith.constant 0 : index
    %49 = vector.load %arg5[%c0_27, %c0_28] : memref<32x32xf32, #tpu.memory_space<vmem>>, vector<32x32xf32>
    %c0_29 = arith.constant 0 : index
    %c0_30 = arith.constant 0 : index
    %50 = vector.load %arg6[%c0_29, %c0_30] : memref<1x32xf32, #tpu.memory_space<vmem>>, vector<1x32xf32>
    %c0_31 = arith.constant 0 : index
    %c0_32 = arith.constant 0 : index
    %51 = vector.load %arg10[%c0_31, %c0_32] : memref<16x32xf32, #tpu.memory_space<vmem>>, vector<16x32xf32>
    %cst_33 = arith.constant dense<0.000000e+00> : vector<16x32xf32>
    %52 = tpu.matmul %51, %48, %cst_33 {dimension_numbers = #tpu.dot_dimension_numbers<[1], [0], [0], [1], [0, 0, 1, 1], [], []>} : vector<16x32xf32>, vector<32x32xf32>, vector<16x32xf32> -> vector<16x32xf32>
    %53 = vector.broadcast %50 : vector<1x32xf32> to vector<16x32xf32>
    %54 = arith.addf %52, %53 : vector<16x32xf32>
    %cst_34 = arith.constant 0.000000e+00 : f32
    %55 = vector.broadcast %cst_34 : f32 to vector<2x32xf32>
    %56 = vector.extract_strided_slice %54 {offsets = [0, 0], sizes = [2, 32], strides = [1, 1]} : vector<16x32xf32> to vector<2x32xf32>
    %cst_35 = arith.constant dense<0.000000e+00> : vector<2x32xf32>
    %57 = tpu.matmul %55, %49, %cst_35 {dimension_numbers = #tpu.dot_dimension_numbers<[1], [0], [0], [1], [0, 0, 1, 1], [], []>} : vector<2x32xf32>, vector<32x32xf32>, vector<2x32xf32> -> vector<2x32xf32>
    %58 = arith.addf %56, %57 : vector<2x32xf32>
    %59 = math.tanh %58 : vector<2x32xf32>
    %60 = vector.extract_strided_slice %54 {offsets = [2, 0], sizes = [2, 32], strides = [1, 1]} : vector<16x32xf32> to vector<2x32xf32>
    %cst_36 = arith.constant dense<0.000000e+00> : vector<2x32xf32>
    %61 = tpu.matmul %59, %49, %cst_36 {dimension_numbers = #tpu.dot_dimension_numbers<[1], [0], [0], [1], [0, 0, 1, 1], [], []>} : vector<2x32xf32>, vector<32x32xf32>, vector<2x32xf32> -> vector<2x32xf32>
    %62 = arith.addf %60, %61 : vector<2x32xf32>
    %63 = math.tanh %62 : vector<2x32xf32>
    %64 = vector.extract_strided_slice %54 {offsets = [4, 0], sizes = [2, 32], strides = [1, 1]} : vector<16x32xf32> to vector<2x32xf32>
    %cst_37 = arith.constant dense<0.000000e+00> : vector<2x32xf32>
    %65 = tpu.matmul %63, %49, %cst_37 {dimension_numbers = #tpu.dot_dimension_numbers<[1], [0], [0], [1], [0, 0, 1, 1], [], []>} : vector<2x32xf32>, vector<32x32xf32>, vector<2x32xf32> -> vector<2x32xf32>
    %66 = arith.addf %64, %65 : vector<2x32xf32>
    %67 = math.tanh %66 : vector<2x32xf32>
    %68 = vector.extract_strided_slice %54 {offsets = [6, 0], sizes = [2, 32], strides = [1, 1]} : vector<16x32xf32> to vector<2x32xf32>
    %cst_38 = arith.constant dense<0.000000e+00> : vector<2x32xf32>
    %69 = tpu.matmul %67, %49, %cst_38 {dimension_numbers = #tpu.dot_dimension_numbers<[1], [0], [0], [1], [0, 0, 1, 1], [], []>} : vector<2x32xf32>, vector<32x32xf32>, vector<2x32xf32> -> vector<2x32xf32>
    %70 = arith.addf %68, %69 : vector<2x32xf32>
    %71 = math.tanh %70 : vector<2x32xf32>
    %72 = vector.extract_strided_slice %54 {offsets = [8, 0], sizes = [2, 32], strides = [1, 1]} : vector<16x32xf32> to vector<2x32xf32>
    %cst_39 = arith.constant dense<0.000000e+00> : vector<2x32xf32>
    %73 = tpu.matmul %71, %49, %cst_39 {dimension_numbers = #tpu.dot_dimension_numbers<[1], [0], [0], [1], [0, 0, 1, 1], [], []>} : vector<2x32xf32>, vector<32x32xf32>, vector<2x32xf32> -> vector<2x32xf32>
    %74 = arith.addf %72, %73 : vector<2x32xf32>
    %75 = math.tanh %74 : vector<2x32xf32>
    %76 = vector.extract_strided_slice %54 {offsets = [10, 0], sizes = [2, 32], strides = [1, 1]} : vector<16x32xf32> to vector<2x32xf32>
    %cst_40 = arith.constant dense<0.000000e+00> : vector<2x32xf32>
    %77 = tpu.matmul %75, %49, %cst_40 {dimension_numbers = #tpu.dot_dimension_numbers<[1], [0], [0], [1], [0, 0, 1, 1], [], []>} : vector<2x32xf32>, vector<32x32xf32>, vector<2x32xf32> -> vector<2x32xf32>
    %78 = arith.addf %76, %77 : vector<2x32xf32>
    %79 = math.tanh %78 : vector<2x32xf32>
    %80 = vector.extract_strided_slice %54 {offsets = [12, 0], sizes = [2, 32], strides = [1, 1]} : vector<16x32xf32> to vector<2x32xf32>
    %cst_41 = arith.constant dense<0.000000e+00> : vector<2x32xf32>
    %81 = tpu.matmul %79, %49, %cst_41 {dimension_numbers = #tpu.dot_dimension_numbers<[1], [0], [0], [1], [0, 0, 1, 1], [], []>} : vector<2x32xf32>, vector<32x32xf32>, vector<2x32xf32> -> vector<2x32xf32>
    %82 = arith.addf %80, %81 : vector<2x32xf32>
    %83 = math.tanh %82 : vector<2x32xf32>
    %84 = vector.extract_strided_slice %54 {offsets = [14, 0], sizes = [2, 32], strides = [1, 1]} : vector<16x32xf32> to vector<2x32xf32>
    %cst_42 = arith.constant dense<0.000000e+00> : vector<2x32xf32>
    %85 = tpu.matmul %83, %49, %cst_42 {dimension_numbers = #tpu.dot_dimension_numbers<[1], [0], [0], [1], [0, 0, 1, 1], [], []>} : vector<2x32xf32>, vector<32x32xf32>, vector<2x32xf32> -> vector<2x32xf32>
    %86 = arith.addf %84, %85 : vector<2x32xf32>
    %87 = math.tanh %86 : vector<2x32xf32>
    %c0_43 = arith.constant 0 : index
    %c0_44 = arith.constant 0 : index
    %88 = vector.load %arg7[%c0_43, %c0_44] : memref<32x10xf32, #tpu.memory_space<vmem>>, vector<32x10xf32>
    %cst_45 = arith.constant dense<0.000000e+00> : vector<2x10xf32>
    %89 = tpu.matmul %87, %88, %cst_45 {dimension_numbers = #tpu.dot_dimension_numbers<[1], [0], [0], [1], [0, 0, 1, 1], [], []>} : vector<2x32xf32>, vector<32x10xf32>, vector<2x10xf32> -> vector<2x10xf32>
    %c0_46 = arith.constant 0 : index
    %c0_47 = arith.constant 0 : index
    %90 = vector.load %arg8[%c0_46, %c0_47] : memref<1x10xf32, #tpu.memory_space<vmem>>, vector<1x10xf32>
    %91 = vector.broadcast %90 : vector<1x10xf32> to vector<2x10xf32>
    %92 = arith.addf %89, %91 : vector<2x10xf32>
    %c0_48 = arith.constant 0 : index
    %c0_49 = arith.constant 0 : index
    %93 = vector.load %arg9[%c0_48, %c0_49] : memref<2x10xf32, #tpu.memory_space<vmem>>, vector<2x10xf32>
    tpu.vector_store %arg9[%c0_48, %c0_49], %92 {strides = array<i32>} : memref<2x10xf32, #tpu.memory_space<vmem>>, vector<2x10xf32>,
    return
  }
}

</mosaic_0001>

<llo_original>
// kernel: vanilla_rnn_forward.1
$region0: #{vanilla_rnn_forward.1}
  #allocation0 [shape = 'u32[]', space=smem, size = 0x4, offset = 0x4, fixed_abs, tag = 'smem constant byte address 0x4 - core index']
  #allocation1 [shape = 'u32[144,128]{1,0:T(1,128)}', space=vmem, size = 0x12000, scoped, tag = 'internal scratch']
  #allocation2 [shape = 'f32[16,32]{1,0:T(8,128)}', space=vmem, size = 0x2000, scoped, tag = 'scratch operand']
  %s0 = inlined_call_operand.vmem [shape: f32[16,16], index: 0, kind: input, shape index: {}]
  %s1 = inlined_call_operand.vmem [shape: f32[16,32], index: 1, kind: input, shape index: {}]
  %s2 = inlined_call_operand.vmem [shape: f32[32,32], index: 2, kind: input, shape index: {}]
  %s3 = inlined_call_operand.vmem [shape: f32[1,32], index: 3, kind: input, shape index: {}]
  %s4 = inlined_call_operand.vmem [shape: f32[32,32], index: 4, kind: input, shape index: {}]
  %s5 = inlined_call_operand.vmem [shape: f32[32,32], index: 5, kind: input, shape index: {}]
  %s6 = inlined_call_operand.vmem [shape: f32[1,32], index: 6, kind: input, shape index: {}]
  %s7 = inlined_call_operand.vmem [shape: f32[32,10], index: 7, kind: input, shape index: {}]
  %s8 = inlined_call_operand.vmem [shape: f32[1,10], index: 8, kind: input, shape index: {}]
  %s9 = inlined_call_operand.hbm [shape: f32[2,10], index: 9, kind: output, shape index: {}]
  %s10 = sld [smem:[#allocation0]]
  $region46: #{vanilla_rnn_forward.1} parent=0
    _
  %s12 = ssub.s32 1, %s10
  %s13 = scalar_select 0, %s12, %s10
  $region1: #{vanilla_rnn_forward.1} parent=0
    #allocation3 [shape = 'u8[1024]{0}', space=vmem, size = 0x400, scoped, tag = 'output window, operand 0, single buffered']
    #allocation4 [shape = 's32[1]{0}', space=sflag, size = 0x4, scoped, tag = 'scoped memory for vanilla_rnn_forward.1']
    %14 = vsyncpa [#allocation4], 0
    // Predicated region
    $region2: #{vanilla_rnn_forward.1} parent=1 // pred_check
      _
    $region3: #{vanilla_rnn_forward.1} parent=1 // pred_check_branch
      %16 = sbr.rel (0) target = $region5
    $region4: #{vanilla_rnn_forward.1} parent=1 // pred_region
      _
    $region5: #{vanilla_rnn_forward.1} parent=1 // pred_fallthru
      _
    // Predicated region
    $region6: #{vanilla_rnn_forward.1} parent=1 // pred_check
      _
    $region7: #{vanilla_rnn_forward.1} parent=1 // pred_check_branch
      %18 = sbr.rel (0) target = $region9
    $region8: #{vanilla_rnn_forward.1} parent=1 // pred_region
      _
    $region9: #{vanilla_rnn_forward.1} parent=1 // pred_fallthru
      _
    // Predicated region
    $region10: #{vanilla_rnn_forward.1} parent=1 // pred_check
      _
    $region11: #{vanilla_rnn_forward.1} parent=1 // pred_check_branch
      %20 = sbr.rel (0) target = $region13
    $region12: #{vanilla_rnn_forward.1} parent=1 // pred_region
      _
    $region13: #{vanilla_rnn_forward.1} parent=1 // pred_fallthru
      _
    // Predicated region
    $region14: #{vanilla_rnn_forward.1} parent=1 // pred_check
      _
    $region15: #{vanilla_rnn_forward.1} parent=1 // pred_check_branch
      %22 = sbr.rel (0) target = $region17
    $region16: #{vanilla_rnn_forward.1} parent=1 // pred_region
      _
    $region17: #{vanilla_rnn_forward.1} parent=1 // pred_fallthru
      _
    // Predicated region
    $region18: #{vanilla_rnn_forward.1} parent=1 // pred_check
      _
    $region19: #{vanilla_rnn_forward.1} parent=1 // pred_check_branch
      %24 = sbr.rel (0) target = $region21
    $region20: #{vanilla_rnn_forward.1} parent=1 // pred_region
      _
    $region21: #{vanilla_rnn_forward.1} parent=1 // pred_fallthru
      _
    // Predicated region
    $region22: #{vanilla_rnn_forward.1} parent=1 // pred_check
      _
    $region23: #{vanilla_rnn_forward.1} parent=1 // pred_check_branch
      %26 = sbr.rel (0) target = $region25
    $region24: #{vanilla_rnn_forward.1} parent=1 // pred_region
      _
    $region25: #{vanilla_rnn_forward.1} parent=1 // pred_fallthru
      _
    // Predicated region
    $region26: #{vanilla_rnn_forward.1} parent=1 // pred_check
      _
    $region27: #{vanilla_rnn_forward.1} parent=1 // pred_check_branch
      %28 = sbr.rel (0) target = $region29
    $region28: #{vanilla_rnn_forward.1} parent=1 // pred_region
      _
    $region29: #{vanilla_rnn_forward.1} parent=1 // pred_fallthru
      _
    // Predicated region
    $region30: #{vanilla_rnn_forward.1} parent=1 // pred_check
      _
    $region31: #{vanilla_rnn_forward.1} parent=1 // pred_check_branch
      %30 = sbr.rel (0) target = $region33
    $region32: #{vanilla_rnn_forward.1} parent=1 // pred_region
      _
    $region33: #{vanilla_rnn_forward.1} parent=1 // pred_fallthru
      _
    // Predicated region
    $region34: #{vanilla_rnn_forward.1} parent=1 // pred_check
      _
    $region35: #{vanilla_rnn_forward.1} parent=1 // pred_check_branch
      %32 = sbr.rel (0) target = $region37
    $region36: #{vanilla_rnn_forward.1} parent=1 // pred_region
      _
    $region37: #{vanilla_rnn_forward.1} parent=1 // pred_fallthru
      _
    %v33 = vld [vmem:[%s1] sm:$0xff]
    %v34 = vld [vmem:[%s1 + $0x8] sm:$0xff]
    %v35 = vld [vmem:[%s2] sm:$0xff]
    %v36 = vld [vmem:[%s2 + $0x8] sm:$0xff]
    %v37 = vld [vmem:[%s2 + $0x10] sm:$0xff]
    %v38 = vld [vmem:[%s2 + $0x18] sm:$0xff]
    %v39 = vld [vmem:[%s3] sm:$0x1]
    %v40 = vld [vmem:[%s0] sm:$0xff]
    %v41 = vld [vmem:[%s0 + $0x8] sm:$0xff]
    %v43 = vlaneseq
    %v44 = vshrl.u32 %v43, 7
    %v45 = vsub.s32 0, %v44
    %v46 = vrot.slane %v39, %v45
    %vm48 = vcmask 130048
    %v50 = vsel %vm48, %v40, 0
    %v53 = vsel %vm48, %v41, 0
    %55 = vmatprep.subr.mxu0 0.0
    %56 = vmatpush1.msra.mxu0 %v33
    %57 = vmatprep.subr.mxu0 0.0
    %58 = vmatpush1.msra.mxu0 %v34
    %59 = vmatprep.subr.mxu0 0.0
    %60 = vmatpush1.msra.mxu0 0.0
    %61 = vmatprep.subr.mxu0 0.0
    %62 = vmatpush1.msra.mxu0 0.0
    %63 = vmatprep.subr.mxu0 0.0
    %64 = vmatpush1.msra.mxu0 0.0
    %65 = vmatprep.subr.mxu0 0.0
    %66 = vmatpush1.msra.mxu0 0.0
    %67 = vmatprep.subr.mxu0 0.0
    %68 = vmatpush1.msra.mxu0 0.0
    %69 = vmatprep.subr.mxu0 0.0
    %70 = vmatpush1.msra.mxu0 0.0
    %71 = vmatprep.subr.mxu0 0.0
    %72 = vmatpush1.msra.mxu0 0.0
    %73 = vmatprep.subr.mxu0 0.0
    %74 = vmatpush1.msra.mxu0 0.0
    %75 = vmatprep.subr.mxu0 0.0
    %76 = vmatpush1.msra.mxu0 0.0
    %77 = vmatprep.subr.mxu0 0.0
    %78 = vmatpush1.msra.mxu0 0.0
    %79 = vmatprep.subr.mxu0 0.0
    %80 = vmatpush1.msra.mxu0 0.0
    %81 = vmatprep.subr.mxu0 0.0
    %82 = vmatpush1.msra.mxu0 0.0
    %83 = vmatprep.subr.mxu0 0.0
    %84 = vmatpush1.msra.mxu0 0.0
    %85 = vmatprep.subr.mxu0 0.0
    %86 = vmatpush1.msra.mxu0 0.0
    %87 = vmatprep.subr.mxu0 0.0
    %88 = vmatpush1.msra.mxu0 0.0
    %89 = vmatprep.subr.mxu0 0.0
    %90 = vmatpush1.msra.mxu0 0.0
    %91 = vmatprep.subr.mxu0 0.0
    %92 = vmatpush1.msra.mxu0 0.0
    %93 = vmatprep.subr.mxu0 0.0
    %94 = vmatpush1.msra.mxu0 0.0
    %95 = vmatprep.subr.mxu0 0.0
    %96 = vmatpush1.msra.mxu0 0.0
    %97 = vmatprep.subr.mxu0 0.0
    %98 = vmatpush1.msra.mxu0 0.0
    %99 = vmatprep.subr.mxu0 0.0
    %100 = vmatpush1.msra.mxu0 0.0
    %101 = vmatprep.subr.mxu0 0.0
    %102 = vmatpush1.msra.mxu0 0.0
    %103 = vmatprep.subr.mxu0 0.0
    %104 = vmatpush1.msra.mxu0 0.0
    %105 = vmatprep.subr.mxu0 0.0
    %106 = vmatpush1.msra.mxu0 0.0
    %107 = vmatprep.subr.mxu0 0.0
    %108 = vmatpush1.msra.mxu0 0.0
    %109 = vmatprep.subr.mxu0 0.0
    %110 = vmatpush1.msra.mxu0 0.0
    %111 = vmatprep.subr.mxu0 0.0
    %112 = vmatpush1.msra.mxu0 0.0
    %113 = vmatprep.subr.mxu0 0.0
    %114 = vmatpush1.msra.mxu0 0.0
    %115 = vmatprep.subr.mxu0 0.0
    %116 = vmatpush1.msra.mxu0 0.0
    %117 = vmatprep.subr.mxu0 0.0
    %118 = vmatpush1.msra.mxu0 0.0
    %119 = vmatprep.mubr.f32.mxu0 0.0
    %120 = vmatmul.mubr.f32.gmra.mrb[0].mxu0 %v50
    %v121 = vpop.f32.mrb[0].mxu0
    %v122 = vadd.f32 %v46, %v121
    %v123 = vpop.f32.mrb[0].mxu0
    %124 = vmatprep.mubr.f32.mxu0 0.0
    %125 = vmatmul.mubr.f32.gmra.mrb[0].mxu0 %v53
    %v126 = vpop.f32.mrb[0].mxu0
    %v127 = vadd.f32 %v46, %v126
    %v128 = vpop.f32.mrb[0].mxu0
    %129 = vdwg.mxu0
    %vm130 = vcmask 261120
    %v132 = vsel %vm130, 0.0, 0
    %134 = vmatprep.subr.mxu0 0.0
    %135 = vmatpush1.msra.mxu0 %v35
    %136 = vmatprep.subr.mxu0 0.0
    %137 = vmatpush1.msra.mxu0 %v36
    %138 = vmatprep.subr.mxu0 0.0
    %139 = vmatpush1.msra.mxu0 %v37
    %140 = vmatprep.subr.mxu0 0.0
    %141 = vmatpush1.msra.mxu0 %v38
    %142 = vmatprep.subr.mxu0 0.0
    %143 = vmatpush1.msra.mxu0 0.0
    %144 = vmatprep.subr.mxu0 0.0
    %145 = vmatpush1.msra.mxu0 0.0
    %146 = vmatprep.subr.mxu0 0.0
    %147 = vmatpush1.msra.mxu0 0.0
    %148 = vmatprep.subr.mxu0 0.0
    %149 = vmatpush1.msra.mxu0 0.0
    %150 = vmatprep.subr.mxu0 0.0
    %151 = vmatpush1.msra.mxu0 0.0
    %152 = vmatprep.subr.mxu0 0.0
    %153 = vmatpush1.msra.mxu0 0.0
    %154 = vmatprep.subr.mxu0 0.0
    %155 = vmatpush1.msra.mxu0 0.0
    %156 = vmatprep.subr.mxu0 0.0
    %157 = vmatpush1.msra.mxu0 0.0
    %158 = vmatprep.subr.mxu0 0.0
    %159 = vmatpush1.msra.mxu0 0.0
    %160 = vmatprep.subr.mxu0 0.0
    %161 = vmatpush1.msra.mxu0 0.0
    %162 = vmatprep.subr.mxu0 0.0
    %163 = vmatpush1.msra.mxu0 0.0
    %164 = vmatprep.subr.mxu0 0.0
    %165 = vmatpush1.msra.mxu0 0.0
    %166 = vmatprep.subr.mxu0 0.0
    %167 = vmatpush1.msra.mxu0 0.0
    %168 = vmatprep.subr.mxu0 0.0
    %169 = vmatpush1.msra.mxu0 0.0
    %170 = vmatprep.subr.mxu0 0.0
    %171 = vmatpush1.msra.mxu0 0.0
    %172 = vmatprep.subr.mxu0 0.0
    %173 = vmatpush1.msra.mxu0 0.0
    %174 = vmatprep.subr.mxu0 0.0
    %175 = vmatpush1.msra.mxu0 0.0
    %176 = vmatprep.subr.mxu0 0.0
    %177 = vmatpush1.msra.mxu0 0.0
    %178 = vmatprep.subr.mxu0 0.0
    %179 = vmatpush1.msra.mxu0 0.0
    %180 = vmatprep.subr.mxu0 0.0
    %181 = vmatpush1.msra.mxu0 0.0
    %182 = vmatprep.subr.mxu0 0.0
    %183 = vmatpush1.msra.mxu0 0.0
    %184 = vmatprep.subr.mxu0 0.0
    %185 = vmatpush1.msra.mxu0 0.0
    %186 = vmatprep.subr.mxu0 0.0
    %187 = vmatpush1.msra.mxu0 0.0
    %188 = vmatprep.subr.mxu0 0.0
    %189 = vmatpush1.msra.mxu0 0.0
    %190 = vmatprep.subr.mxu0 0.0
    %191 = vmatpush1.msra.mxu0 0.0
    %192 = vmatprep.subr.mxu0 0.0
    %193 = vmatpush1.msra.mxu0 0.0
    %194 = vmatprep.subr.mxu0 0.0
    %195 = vmatpush1.msra.mxu0 0.0
    %196 = vmatprep.subr.mxu0 0.0
    %197 = vmatpush1.msra.mxu0 0.0
    %198 = vmatprep.mubr.f32.mxu0 0.0
    %199 = vmatmul.mubr.f32.gmra.mrb[0].mxu0 %v132
    %v200 = vpop.f32.mrb[0].mxu0
    %v201 = vadd.f32 0.0, %v200
    %v202 = vpop.f32.mrb[0].mxu0
    %203 = vdwg.mxu0
    %v204 = vadd.f32 %v122, %v201
    %v205 = vtanh.pop %v204
    %vm206 = vcmask 254976
    %207 = vst.msk [vmem:[#allocation2] sm:$0x3] %vm206, %v205
    %v209 = vsel %vm130, %v205, 0
    %211 = vmatprep.subr.mxu0 0.0
    %212 = vmatpush1.msra.mxu0 %v35
    %213 = vmatprep.subr.mxu0 0.0
    %214 = vmatpush1.msra.mxu0 %v36
    %215 = vmatprep.subr.mxu0 0.0
    %216 = vmatpush1.msra.mxu0 %v37
    %217 = vmatprep.subr.mxu0 0.0
    %218 = vmatpush1.msra.mxu0 %v38
    %219 = vmatprep.subr.mxu0 0.0
    %220 = vmatpush1.msra.mxu0 0.0
    %221 = vmatprep.subr.mxu0 0.0
    %222 = vmatpush1.msra.mxu0 0.0
    %223 = vmatprep.subr.mxu0 0.0
    %224 = vmatpush1.msra.mxu0 0.0
    %225 = vmatprep.subr.mxu0 0.0
    %226 = vmatpush1.msra.mxu0 0.0
    %227 = vmatprep.subr.mxu0 0.0
    %228 = vmatpush1.msra.mxu0 0.0
    %229 = vmatprep.subr.mxu0 0.0
    %230 = vmatpush1.msra.mxu0 0.0
    %231 = vmatprep.subr.mxu0 0.0
    %232 = vmatpush1.msra.mxu0 0.0
    %233 = vmatprep.subr.mxu0 0.0
    %234 = vmatpush1.msra.mxu0 0.0
    %235 = vmatprep.subr.mxu0 0.0
    %236 = vmatpush1.msra.mxu0 0.0
    %237 = vmatprep.subr.mxu0 0.0
    %238 = vmatpush1.msra.mxu0 0.0
    %239 = vmatprep.subr.mxu0 0.0
    %240 = vmatpush1.msra.mxu0 0.0
    %241 = vmatprep.subr.mxu0 0.0
    %242 = vmatpush1.msra.mxu0 0.0
    %243 = vmatprep.subr.mxu0 0.0
    %244 = vmatpush1.msra.mxu0 0.0
    %245 = vmatprep.subr.mxu0 0.0
    %246 = vmatpush1.msra.mxu0 0.0
    %247 = vmatprep.subr.mxu0 0.0
    %248 = vmatpush1.msra.mxu0 0.0
    %249 = vmatprep.subr.mxu0 0.0
    %250 = vmatpush1.msra.mxu0 0.0
    %251 = vmatprep.subr.mxu0 0.0
    %252 = vmatpush1.msra.mxu0 0.0
    %253 = vmatprep.subr.mxu0 0.0
    %254 = vmatpush1.msra.mxu0 0.0
    %255 = vmatprep.subr.mxu0 0.0
    %256 = vmatpush1.msra.mxu0 0.0
    %257 = vmatprep.subr.mxu0 0.0
    %258 = vmatpush1.msra.mxu0 0.0
    %259 = vmatprep.subr.mxu0 0.0
    %260 = vmatpush1.msra.mxu0 0.0
    %261 = vmatprep.subr.mxu0 0.0
    %262 = vmatpush1.msra.mxu0 0.0
    %263 = vmatprep.subr.mxu0 0.0
    %264 = vmatpush1.msra.mxu0 0.0
    %265 = vmatprep.subr.mxu0 0.0
    %266 = vmatpush1.msra.mxu0 0.0
    %267 = vmatprep.subr.mxu0 0.0
    %268 = vmatpush1.msra.mxu0 0.0
    %269 = vmatprep.subr.mxu0 0.0
    %270 = vmatpush1.msra.mxu0 0.0
    %271 = vmatprep.subr.mxu0 0.0
    %272 = vmatpush1.msra.mxu0 0.0
    %273 = vmatprep.subr.mxu0 0.0
    %274 = vmatpush1.msra.mxu0 0.0
    %275 = vmatprep.mubr.f32.mxu0 0.0
    %276 = vmatmul.mubr.f32.gmra.mrb[0].mxu0 %v209
    %v277 = vpop.f32.mrb[0].mxu0
    %v278 = vadd.f32 0.0, %v277
    %v279 = vpop.f32.mrb[0].mxu0
    %280 = vdwg.mxu0
    %v282 = vrot.slane %v278, 6
    %v284 = vadd.f32 %v122, %v282
    %v285 = vtanh.pop %v284
    %vm286 = vcmask 257026
    %287 = vst.msk [vmem:[#allocation2] sm:$0xc] %vm286, %v285
    %v289 = vrot.slane %v285, 2
    %v290 = vsel %vm130, %v289, 0
    %292 = vmatprep.subr.mxu0 0.0
    %293 = vmatpush1.msra.mxu0 %v35
    %294 = vmatprep.subr.mxu0 0.0
    %295 = vmatpush1.msra.mxu0 %v36
    %296 = vmatprep.subr.mxu0 0.0
    %297 = vmatpush1.msra.mxu0 %v37
    %298 = vmatprep.subr.mxu0 0.0
    %299 = vmatpush1.msra.mxu0 %v38
    %300 = vmatprep.subr.mxu0 0.0
    %301 = vmatpush1.msra.mxu0 0.0
    %302 = vmatprep.subr.mxu0 0.0
    %303 = vmatpush1.msra.mxu0 0.0
    %304 = vmatprep.subr.mxu0 0.0
    %305 = vmatpush1.msra.mxu0 0.0
    %306 = vmatprep.subr.mxu0 0.0
    %307 = vmatpush1.msra.mxu0 0.0
    %308 = vmatprep.subr.mxu0 0.0
    %309 = vmatpush1.msra.mxu0 0.0
    %310 = vmatprep.subr.mxu0 0.0
    %311 = vmatpush1.msra.mxu0 0.0
    %312 = vmatprep.subr.mxu0 0.0
    %313 = vmatpush1.msra.mxu0 0.0
    %314 = vmatprep.subr.mxu0 0.0
    %315 = vmatpush1.msra.mxu0 0.0
    %316 = vmatprep.subr.mxu0 0.0
    %317 = vmatpush1.msra.mxu0 0.0
    %318 = vmatprep.subr.mxu0 0.0
    %319 = vmatpush1.msra.mxu0 0.0
    %320 = vmatprep.subr.mxu0 0.0
    %321 = vmatpush1.msra.mxu0 0.0
    %322 = vmatprep.subr.mxu0 0.0
    %323 = vmatpush1.msra.mxu0 0.0
    %324 = vmatprep.subr.mxu0 0.0
    %325 = vmatpush1.msra.mxu0 0.0
    %326 = vmatprep.subr.mxu0 0.0
    %327 = vmatpush1.msra.mxu0 0.0
    %328 = vmatprep.subr.mxu0 0.0
    %329 = vmatpush1.msra.mxu0 0.0
    %330 = vmatprep.subr.mxu0 0.0
    %331 = vmatpush1.msra.mxu0 0.0
    %332 = vmatprep.subr.mxu0 0.0
    %333 = vmatpush1.msra.mxu0 0.0
    %334 = vmatprep.subr.mxu0 0.0
    %335 = vmatpush1.msra.mxu0 0.0
    %336 = vmatprep.subr.mxu0 0.0
    %337 = vmatpush1.msra.mxu0 0.0
    %338 = vmatprep.subr.mxu0 0.0
    %339 = vmatpush1.msra.mxu0 0.0
    %340 = vmatprep.subr.mxu0 0.0
    %341 = vmatpush1.msra.mxu0 0.0
    %342 = vmatprep.subr.mxu0 0.0
    %343 = vmatpush1.msra.mxu0 0.0
    %344 = vmatprep.subr.mxu0 0.0
    %345 = vmatpush1.msra.mxu0 0.0
    %346 = vmatprep.subr.mxu0 0.0
    %347 = vmatpush1.msra.mxu0 0.0
    %348 = vmatprep.subr.mxu0 0.0
    %349 = vmatpush1.msra.mxu0 0.0
    %350 = vmatprep.subr.mxu0 0.0
    %351 = vmatpush1.msra.mxu0 0.0
    %352 = vmatprep.subr.mxu0 0.0
    %353 = vmatpush1.msra.mxu0 0.0
    %354 = vmatprep.subr.mxu0 0.0
    %355 = vmatpush1.msra.mxu0 0.0
    %356 = vmatprep.mubr.f32.mxu0 0.0
    %357 = vmatmul.mubr.f32.gmra.mrb[0].mxu0 %v290
    %v358 = vpop.f32.mrb[0].mxu0
    %v359 = vadd.f32 0.0, %v358
    %v360 = vpop.f32.mrb[0].mxu0
    %361 = vdwg.mxu0
    %v363 = vrot.slane %v359, 4
    %v365 = vadd.f32 %v122, %v363
    %v366 = vtanh.pop %v365
    %vm367 = vcmask 259076
    %368 = vst.msk [vmem:[#allocation2] sm:$0x30] %vm367, %v366
    %v370 = vrot.slane %v366, 4
    %v371 = vsel %vm130, %v370, 0
    %373 = vmatprep.subr.mxu0 0.0
    %374 = vmatpush1.msra.mxu0 %v35
    %375 = vmatprep.subr.mxu0 0.0
    %376 = vmatpush1.msra.mxu0 %v36
    %377 = vmatprep.subr.mxu0 0.0
    %378 = vmatpush1.msra.mxu0 %v37
    %379 = vmatprep.subr.mxu0 0.0
    %380 = vmatpush1.msra.mxu0 %v38
    %381 = vmatprep.subr.mxu0 0.0
    %382 = vmatpush1.msra.mxu0 0.0
    %383 = vmatprep.subr.mxu0 0.0
    %384 = vmatpush1.msra.mxu0 0.0
    %385 = vmatprep.subr.mxu0 0.0
    %386 = vmatpush1.msra.mxu0 0.0
    %387 = vmatprep.subr.mxu0 0.0
    %388 = vmatpush1.msra.mxu0 0.0
    %389 = vmatprep.subr.mxu0 0.0
    %390 = vmatpush1.msra.mxu0 0.0
    %391 = vmatprep.subr.mxu0 0.0
    %392 = vmatpush1.msra.mxu0 0.0
    %393 = vmatprep.subr.mxu0 0.0
    %394 = vmatpush1.msra.mxu0 0.0
    %395 = vmatprep.subr.mxu0 0.0
    %396 = vmatpush1.msra.mxu0 0.0
    %397 = vmatprep.subr.mxu0 0.0
    %398 = vmatpush1.msra.mxu0 0.0
    %399 = vmatprep.subr.mxu0 0.0
    %400 = vmatpush1.msra.mxu0 0.0
    %401 = vmatprep.subr.mxu0 0.0
    %402 = vmatpush1.msra.mxu0 0.0
    %403 = vmatprep.subr.mxu0 0.0
    %404 = vmatpush1.msra.mxu0 0.0
    %405 = vmatprep.subr.mxu0 0.0
    %406 = vmatpush1.msra.mxu0 0.0
    %407 = vmatprep.subr.mxu0 0.0
    %408 = vmatpush1.msra.mxu0 0.0
    %409 = vmatprep.subr.mxu0 0.0
    %410 = vmatpush1.msra.mxu0 0.0
    %411 = vmatprep.subr.mxu0 0.0
    %412 = vmatpush1.msra.mxu0 0.0
    %413 = vmatprep.subr.mxu0 0.0
    %414 = vmatpush1.msra.mxu0 0.0
    %415 = vmatprep.subr.mxu0 0.0
    %416 = vmatpush1.msra.mxu0 0.0
    %417 = vmatprep.subr.mxu0 0.0
    %418 = vmatpush1.msra.mxu0 0.0
    %419 = vmatprep.subr.mxu0 0.0
    %420 = vmatpush1.msra.mxu0 0.0
    %421 = vmatprep.subr.mxu0 0.0
    %422 = vmatpush1.msra.mxu0 0.0
    %423 = vmatprep.subr.mxu0 0.0
    %424 = vmatpush1.msra.mxu0 0.0
    %425 = vmatprep.subr.mxu0 0.0
    %426 = vmatpush1.msra.mxu0 0.0
    %427 = vmatprep.subr.mxu0 0.0
    %428 = vmatpush1.msra.mxu0 0.0
    %429 = vmatprep.subr.mxu0 0.0
    %430 = vmatpush1.msra.mxu0 0.0
    %431 = vmatprep.subr.mxu0 0.0
    %432 = vmatpush1.msra.mxu0 0.0
    %433 = vmatprep.subr.mxu0 0.0
    %434 = vmatpush1.msra.mxu0 0.0
    %435 = vmatprep.subr.mxu0 0.0
    %436 = vmatpush1.msra.mxu0 0.0
    %437 = vmatprep.mubr.f32.mxu0 0.0
    %438 = vmatmul.mubr.f32.gmra.mrb[0].mxu0 %v371
    %v439 = vpop.f32.mrb[0].mxu0
    %v440 = vadd.f32 0.0, %v439
    %v441 = vpop.f32.mrb[0].mxu0
    %442 = vdwg.mxu0
    %v444 = vrot.slane %v440, 2
    %v446 = vadd.f32 %v122, %v444
    %v447 = vtanh.pop %v446
    %vm448 = vcmask 261126
    %449 = vst.msk [vmem:[#allocation2] sm:$0xc0] %vm448, %v447
    %v451 = vrot.slane %v447, 6
    %v452 = vsel %vm130, %v451, 0
    %454 = vmatprep.subr.mxu0 0.0
    %455 = vmatpush1.msra.mxu0 %v35
    %456 = vmatprep.subr.mxu0 0.0
    %457 = vmatpush1.msra.mxu0 %v36
    %458 = vmatprep.subr.mxu0 0.0
    %459 = vmatpush1.msra.mxu0 %v37
    %460 = vmatprep.subr.mxu0 0.0
    %461 = vmatpush1.msra.mxu0 %v38
    %462 = vmatprep.subr.mxu0 0.0
    %463 = vmatpush1.msra.mxu0 0.0
    %464 = vmatprep.subr.mxu0 0.0
    %465 = vmatpush1.msra.mxu0 0.0
    %466 = vmatprep.subr.mxu0 0.0
    %467 = vmatpush1.msra.mxu0 0.0
    %468 = vmatprep.subr.mxu0 0.0
    %469 = vmatpush1.msra.mxu0 0.0
    %470 = vmatprep.subr.mxu0 0.0
    %471 = vmatpush1.msra.mxu0 0.0
    %472 = vmatprep.subr.mxu0 0.0
    %473 = vmatpush1.msra.mxu0 0.0
    %474 = vmatprep.subr.mxu0 0.0
    %475 = vmatpush1.msra.mxu0 0.0
    %476 = vmatprep.subr.mxu0 0.0
    %477 = vmatpush1.msra.mxu0 0.0
    %478 = vmatprep.subr.mxu0 0.0
    %479 = vmatpush1.msra.mxu0 0.0
    %480 = vmatprep.subr.mxu0 0.0
    %481 = vmatpush1.msra.mxu0 0.0
    %482 = vmatprep.subr.mxu0 0.0
    %483 = vmatpush1.msra.mxu0 0.0
    %484 = vmatprep.subr.mxu0 0.0
    %485 = vmatpush1.msra.mxu0 0.0
    %486 = vmatprep.subr.mxu0 0.0
    %487 = vmatpush1.msra.mxu0 0.0
    %488 = vmatprep.subr.mxu0 0.0
    %489 = vmatpush1.msra.mxu0 0.0
    %490 = vmatprep.subr.mxu0 0.0
    %491 = vmatpush1.msra.mxu0 0.0
    %492 = vmatprep.subr.mxu0 0.0
    %493 = vmatpush1.msra.mxu0 0.0
    %494 = vmatprep.subr.mxu0 0.0
    %495 = vmatpush1.msra.mxu0 0.0
    %496 = vmatprep.subr.mxu0 0.0
    %497 = vmatpush1.msra.mxu0 0.0
    %498 = vmatprep.subr.mxu0 0.0
    %499 = vmatpush1.msra.mxu0 0.0
    %500 = vmatprep.subr.mxu0 0.0
    %501 = vmatpush1.msra.mxu0 0.0
    %502 = vmatprep.subr.mxu0 0.0
    %503 = vmatpush1.msra.mxu0 0.0
    %504 = vmatprep.subr.mxu0 0.0
    %505 = vmatpush1.msra.mxu0 0.0
    %506 = vmatprep.subr.mxu0 0.0
    %507 = vmatpush1.msra.mxu0 0.0
    %508 = vmatprep.subr.mxu0 0.0
    %509 = vmatpush1.msra.mxu0 0.0
    %510 = vmatprep.subr.mxu0 0.0
    %511 = vmatpush1.msra.mxu0 0.0
    %512 = vmatprep.subr.mxu0 0.0
    %513 = vmatpush1.msra.mxu0 0.0
    %514 = vmatprep.subr.mxu0 0.0
    %515 = vmatpush1.msra.mxu0 0.0
    %516 = vmatprep.subr.mxu0 0.0
    %517 = vmatpush1.msra.mxu0 0.0
    %518 = vmatprep.mubr.f32.mxu0 0.0
    %519 = vmatmul.mubr.f32.gmra.mrb[0].mxu0 %v452
    %v520 = vpop.f32.mrb[0].mxu0
    %v521 = vadd.f32 0.0, %v520
    %v522 = vpop.f32.mrb[0].mxu0
    %523 = vdwg.mxu0
    %v524 = vadd.f32 %v127, %v521
    %v525 = vtanh.pop %v524
    %526 = vst.msk [vmem:[#allocation2 + $0x8] sm:$0x3] %vm206, %v525
    %v528 = vsel %vm130, %v525, 0
    %530 = vmatprep.subr.mxu0 0.0
    %531 = vmatpush1.msra.mxu0 %v35
    %532 = vmatprep.subr.mxu0 0.0
    %533 = vmatpush1.msra.mxu0 %v36
    %534 = vmatprep.subr.mxu0 0.0
    %535 = vmatpush1.msra.mxu0 %v37
    %536 = vmatprep.subr.mxu0 0.0
    %537 = vmatpush1.msra.mxu0 %v38
    %538 = vmatprep.subr.mxu0 0.0
    %539 = vmatpush1.msra.mxu0 0.0
    %540 = vmatprep.subr.mxu0 0.0
    %541 = vmatpush1.msra.mxu0 0.0
    %542 = vmatprep.subr.mxu0 0.0
    %543 = vmatpush1.msra.mxu0 0.0
    %544 = vmatprep.subr.mxu0 0.0
    %545 = vmatpush1.msra.mxu0 0.0
    %546 = vmatprep.subr.mxu0 0.0
    %547 = vmatpush1.msra.mxu0 0.0
    %548 = vmatprep.subr.mxu0 0.0
    %549 = vmatpush1.msra.mxu0 0.0
    %550 = vmatprep.subr.mxu0 0.0
    %551 = vmatpush1.msra.mxu0 0.0
    %552 = vmatprep.subr.mxu0 0.0
    %553 = vmatpush1.msra.mxu0 0.0
    %554 = vmatprep.subr.mxu0 0.0
    %555 = vmatpush1.msra.mxu0 0.0
    %556 = vmatprep.subr.mxu0 0.0
    %557 = vmatpush1.msra.mxu0 0.0
    %558 = vmatprep.subr.mxu0 0.0
    %559 = vmatpush1.msra.mxu0 0.0
    %560 = vmatprep.subr.mxu0 0.0
    %561 = vmatpush1.msra.mxu0 0.0
    %562 = vmatprep.subr.mxu0 0.0
    %563 = vmatpush1.msra.mxu0 0.0
    %564 = vmatprep.subr.mxu0 0.0
    %565 = vmatpush1.msra.mxu0 0.0
    %566 = vmatprep.subr.mxu0 0.0
    %567 = vmatpush1.msra.mxu0 0.0
    %568 = vmatprep.subr.mxu0 0.0
    %569 = vmatpush1.msra.mxu0 0.0
    %570 = vmatprep.subr.mxu0 0.0
    %571 = vmatpush1.msra.mxu0 0.0
    %572 = vmatprep.subr.mxu0 0.0
    %573 = vmatpush1.msra.mxu0 0.0
    %574 = vmatprep.subr.mxu0 0.0
    %575 = vmatpush1.msra.mxu0 0.0
    %576 = vmatprep.subr.mxu0 0.0
    %577 = vmatpush1.msra.mxu0 0.0
    %578 = vmatprep.subr.mxu0 0.0
    %579 = vmatpush1.msra.mxu0 0.0
    %580 = vmatprep.subr.mxu0 0.0
    %581 = vmatpush1.msra.mxu0 0.0
    %582 = vmatprep.subr.mxu0 0.0
    %583 = vmatpush1.msra.mxu0 0.0
    %584 = vmatprep.subr.mxu0 0.0
    %585 = vmatpush1.msra.mxu0 0.0
    %586 = vmatprep.subr.mxu0 0.0
    %587 = vmatpush1.msra.mxu0 0.0
    %588 = vmatprep.subr.mxu0 0.0
    %589 = vmatpush1.msra.mxu0 0.0
    %590 = vmatprep.subr.mxu0 0.0
    %591 = vmatpush1.msra.mxu0 0.0
    %592 = vmatprep.subr.mxu0 0.0
    %593 = vmatpush1.msra.mxu0 0.0
    %594 = vmatprep.mubr.f32.mxu0 0.0
    %595 = vmatmul.mubr.f32.gmra.mrb[0].mxu0 %v528
    %v596 = vpop.f32.mrb[0].mxu0
    %v597 = vadd.f32 0.0, %v596
    %v598 = vpop.f32.mrb[0].mxu0
    %599 = vdwg.mxu0
    %v601 = vrot.slane %v597, 6
    %v603 = vadd.f32 %v127, %v601
    %v604 = vtanh.pop %v603
    %605 = vst.msk [vmem:[#allocation2 + $0x8] sm:$0xc] %vm286, %v604
    %v607 = vrot.slane %v604, 2
    %v608 = vsel %vm130, %v607, 0
    %610 = vmatprep.subr.mxu0 0.0
    %611 = vmatpush1.msra.mxu0 %v35
    %612 = vmatprep.subr.mxu0 0.0
    %613 = vmatpush1.msra.mxu0 %v36
    %614 = vmatprep.subr.mxu0 0.0
    %615 = vmatpush1.msra.mxu0 %v37
    %616 = vmatprep.subr.mxu0 0.0
    %617 = vmatpush1.msra.mxu0 %v38
    %618 = vmatprep.subr.mxu0 0.0
    %619 = vmatpush1.msra.mxu0 0.0
    %620 = vmatprep.subr.mxu0 0.0
    %621 = vmatpush1.msra.mxu0 0.0
    %622 = vmatprep.subr.mxu0 0.0
    %623 = vmatpush1.msra.mxu0 0.0
    %624 = vmatprep.subr.mxu0 0.0
    %625 = vmatpush1.msra.mxu0 0.0
    %626 = vmatprep.subr.mxu0 0.0
    %627 = vmatpush1.msra.mxu0 0.0
    %628 = vmatprep.subr.mxu0 0.0
    %629 = vmatpush1.msra.mxu0 0.0
    %630 = vmatprep.subr.mxu0 0.0
    %631 = vmatpush1.msra.mxu0 0.0
    %632 = vmatprep.subr.mxu0 0.0
    %633 = vmatpush1.msra.mxu0 0.0
    %634 = vmatprep.subr.mxu0 0.0
    %635 = vmatpush1.msra.mxu0 0.0
    %636 = vmatprep.subr.mxu0 0.0
    %637 = vmatpush1.msra.mxu0 0.0
    %638 = vmatprep.subr.mxu0 0.0
    %639 = vmatpush1.msra.mxu0 0.0
    %640 = vmatprep.subr.mxu0 0.0
    %641 = vmatpush1.msra.mxu0 0.0
    %642 = vmatprep.subr.mxu0 0.0
    %643 = vmatpush1.msra.mxu0 0.0
    %644 = vmatprep.subr.mxu0 0.0
    %645 = vmatpush1.msra.mxu0 0.0
    %646 = vmatprep.subr.mxu0 0.0
    %647 = vmatpush1.msra.mxu0 0.0
    %648 = vmatprep.subr.mxu0 0.0
    %649 = vmatpush1.msra.mxu0 0.0
    %650 = vmatprep.subr.mxu0 0.0
    %651 = vmatpush1.msra.mxu0 0.0
    %652 = vmatprep.subr.mxu0 0.0
    %653 = vmatpush1.msra.mxu0 0.0
    %654 = vmatprep.subr.mxu0 0.0
    %655 = vmatpush1.msra.mxu0 0.0
    %656 = vmatprep.subr.mxu0 0.0
    %657 = vmatpush1.msra.mxu0 0.0
    %658 = vmatprep.subr.mxu0 0.0
    %659 = vmatpush1.msra.mxu0 0.0
    %660 = vmatprep.subr.mxu0 0.0
    %661 = vmatpush1.msra.mxu0 0.0
    %662 = vmatprep.subr.mxu0 0.0
    %663 = vmatpush1.msra.mxu0 0.0
    %664 = vmatprep.subr.mxu0 0.0
    %665 = vmatpush1.msra.mxu0 0.0
    %666 = vmatprep.subr.mxu0 0.0
    %667 = vmatpush1.msra.mxu0 0.0
    %668 = vmatprep.subr.mxu0 0.0
    %669 = vmatpush1.msra.mxu0 0.0
    %670 = vmatprep.subr.mxu0 0.0
    %671 = vmatpush1.msra.mxu0 0.0
    %672 = vmatprep.subr.mxu0 0.0
    %673 = vmatpush1.msra.mxu0 0.0
    %674 = vmatprep.mubr.f32.mxu0 0.0
    %675 = vmatmul.mubr.f32.gmra.mrb[0].mxu0 %v608
    %v676 = vpop.f32.mrb[0].mxu0
    %v677 = vadd.f32 0.0, %v676
    %v678 = vpop.f32.mrb[0].mxu0
    %679 = vdwg.mxu0
    %v681 = vrot.slane %v677, 4
    %v683 = vadd.f32 %v127, %v681
    %v684 = vtanh.pop %v683
    %685 = vst.msk [vmem:[#allocation2 + $0x8] sm:$0x30] %vm367, %v684
    %v687 = vrot.slane %v684, 4
    %v688 = vsel %vm130, %v687, 0
    %690 = vmatprep.subr.mxu0 0.0
    %691 = vmatpush1.msra.mxu0 %v35
    %692 = vmatprep.subr.mxu0 0.0
    %693 = vmatpush1.msra.mxu0 %v36
    %694 = vmatprep.subr.mxu0 0.0
    %695 = vmatpush1.msra.mxu0 %v37
    %696 = vmatprep.subr.mxu0 0.0
    %697 = vmatpush1.msra.mxu0 %v38
    %698 = vmatprep.subr.mxu0 0.0
    %699 = vmatpush1.msra.mxu0 0.0
    %700 = vmatprep.subr.mxu0 0.0
    %701 = vmatpush1.msra.mxu0 0.0
    %702 = vmatprep.subr.mxu0 0.0
    %703 = vmatpush1.msra.mxu0 0.0
    %704 = vmatprep.subr.mxu0 0.0
    %705 = vmatpush1.msra.mxu0 0.0
    %706 = vmatprep.subr.mxu0 0.0
    %707 = vmatpush1.msra.mxu0 0.0
    %708 = vmatprep.subr.mxu0 0.0
    %709 = vmatpush1.msra.mxu0 0.0
    %710 = vmatprep.subr.mxu0 0.0
    %711 = vmatpush1.msra.mxu0 0.0
    %712 = vmatprep.subr.mxu0 0.0
    %713 = vmatpush1.msra.mxu0 0.0
    %714 = vmatprep.subr.mxu0 0.0
    %715 = vmatpush1.msra.mxu0 0.0
    %716 = vmatprep.subr.mxu0 0.0
    %717 = vmatpush1.msra.mxu0 0.0
    %718 = vmatprep.subr.mxu0 0.0
    %719 = vmatpush1.msra.mxu0 0.0
    %720 = vmatprep.subr.mxu0 0.0
    %721 = vmatpush1.msra.mxu0 0.0
    %722 = vmatprep.subr.mxu0 0.0
    %723 = vmatpush1.msra.mxu0 0.0
    %724 = vmatprep.subr.mxu0 0.0
    %725 = vmatpush1.msra.mxu0 0.0
    %726 = vmatprep.subr.mxu0 0.0
    %727 = vmatpush1.msra.mxu0 0.0
    %728 = vmatprep.subr.mxu0 0.0
    %729 = vmatpush1.msra.mxu0 0.0
    %730 = vmatprep.subr.mxu0 0.0
    %731 = vmatpush1.msra.mxu0 0.0
    %732 = vmatprep.subr.mxu0 0.0
    %733 = vmatpush1.msra.mxu0 0.0
    %734 = vmatprep.subr.mxu0 0.0
    %735 = vmatpush1.msra.mxu0 0.0
    %736 = vmatprep.subr.mxu0 0.0
    %737 = vmatpush1.msra.mxu0 0.0
    %738 = vmatprep.subr.mxu0 0.0
    %739 = vmatpush1.msra.mxu0 0.0
    %740 = vmatprep.subr.mxu0 0.0
    %741 = vmatpush1.msra.mxu0 0.0
    %742 = vmatprep.subr.mxu0 0.0
    %743 = vmatpush1.msra.mxu0 0.0
    %744 = vmatprep.subr.mxu0 0.0
    %745 = vmatpush1.msra.mxu0 0.0
    %746 = vmatprep.subr.mxu0 0.0
    %747 = vmatpush1.msra.mxu0 0.0
    %748 = vmatprep.subr.mxu0 0.0
    %749 = vmatpush1.msra.mxu0 0.0
    %750 = vmatprep.subr.mxu0 0.0
    %751 = vmatpush1.msra.mxu0 0.0
    %752 = vmatprep.subr.mxu0 0.0
    %753 = vmatpush1.msra.mxu0 0.0
    %754 = vmatprep.mubr.f32.mxu0 0.0
    %755 = vmatmul.mubr.f32.gmra.mrb[0].mxu0 %v688
    %v756 = vpop.f32.mrb[0].mxu0
    %v757 = vadd.f32 0.0, %v756
    %v758 = vpop.f32.mrb[0].mxu0
    %759 = vdwg.mxu0
    %v761 = vrot.slane %v757, 2
    %v763 = vadd.f32 %v127, %v761
    %v764 = vtanh.pop %v763
    %765 = vst.msk [vmem:[#allocation2 + $0x8] sm:$0xc0] %vm448, %v764
    %v766 = vld [vmem:[%s4] sm:$0xff]
    %v767 = vld [vmem:[%s4 + $0x8] sm:$0xff]
    %v768 = vld [vmem:[%s4 + $0x10] sm:$0xff]
    %v769 = vld [vmem:[%s4 + $0x18] sm:$0xff]
    %v770 = vld [vmem:[%s5] sm:$0xff]
    %v771 = vld [vmem:[%s5 + $0x8] sm:$0xff]
    %v772 = vld [vmem:[%s5 + $0x10] sm:$0xff]
    %v773 = vld [vmem:[%s5 + $0x18] sm:$0xff]
    %v774 = vld [vmem:[%s6] sm:$0x1]
    %v775 = vld [vmem:[#allocation2] sm:$0xff]
    %v776 = vld [vmem:[#allocation2 + $0x8] sm:$0xff]
    %v778 = vlaneseq
    %v779 = vshrl.u32 %v778, 7
    %v780 = vsub.s32 0, %v779
    %v781 = vrot.slane %v774, %v780
    %v784 = vsel %vm130, %v775, 0
    %v787 = vsel %vm130, %v776, 0
    %789 = vmatprep.subr.mxu0 0.0
    %790 = vmatpush1.msra.mxu0 %v766
    %791 = vmatprep.subr.mxu0 0.0
    %792 = vmatpush1.msra.mxu0 %v767
    %793 = vmatprep.subr.mxu0 0.0
    %794 = vmatpush1.msra.mxu0 %v768
    %795 = vmatprep.subr.mxu0 0.0
    %796 = vmatpush1.msra.mxu0 %v769
    %797 = vmatprep.subr.mxu0 0.0
    %798 = vmatpush1.msra.mxu0 0.0
    %799 = vmatprep.subr.mxu0 0.0
    %800 = vmatpush1.msra.mxu0 0.0
    %801 = vmatprep.subr.mxu0 0.0
    %802 = vmatpush1.msra.mxu0 0.0
    %803 = vmatprep.subr.mxu0 0.0
    %804 = vmatpush1.msra.mxu0 0.0
    %805 = vmatprep.subr.mxu0 0.0
    %806 = vmatpush1.msra.mxu0 0.0
    %807 = vmatprep.subr.mxu0 0.0
    %808 = vmatpush1.msra.mxu0 0.0
    %809 = vmatprep.subr.mxu0 0.0
    %810 = vmatpush1.msra.mxu0 0.0
    %811 = vmatprep.subr.mxu0 0.0
    %812 = vmatpush1.msra.mxu0 0.0
    %813 = vmatprep.subr.mxu0 0.0
    %814 = vmatpush1.msra.mxu0 0.0
    %815 = vmatprep.subr.mxu0 0.0
    %816 = vmatpush1.msra.mxu0 0.0
    %817 = vmatprep.subr.mxu0 0.0
    %818 = vmatpush1.msra.mxu0 0.0
    %819 = vmatprep.subr.mxu0 0.0
    %820 = vmatpush1.msra.mxu0 0.0
    %821 = vmatprep.subr.mxu0 0.0
    %822 = vmatpush1.msra.mxu0 0.0
    %823 = vmatprep.subr.mxu0 0.0
    %824 = vmatpush1.msra.mxu0 0.0
    %825 = vmatprep.subr.mxu0 0.0
    %826 = vmatpush1.msra.mxu0 0.0
    %827 = vmatprep.subr.mxu0 0.0
    %828 = vmatpush1.msra.mxu0 0.0
    %829 = vmatprep.subr.mxu0 0.0
    %830 = vmatpush1.msra.mxu0 0.0
    %831 = vmatprep.subr.mxu0 0.0
    %832 = vmatpush1.msra.mxu0 0.0
    %833 = vmatprep.subr.mxu0 0.0
    %834 = vmatpush1.msra.mxu0 0.0
    %835 = vmatprep.subr.mxu0 0.0
    %836 = vmatpush1.msra.mxu0 0.0
    %837 = vmatprep.subr.mxu0 0.0
    %838 = vmatpush1.msra.mxu0 0.0
    %839 = vmatprep.subr.mxu0 0.0
    %840 = vmatpush1.msra.mxu0 0.0
    %841 = vmatprep.subr.mxu0 0.0
    %842 = vmatpush1.msra.mxu0 0.0
    %843 = vmatprep.subr.mxu0 0.0
    %844 = vmatpush1.msra.mxu0 0.0
    %845 = vmatprep.subr.mxu0 0.0
    %846 = vmatpush1.msra.mxu0 0.0
    %847 = vmatprep.subr.mxu0 0.0
    %848 = vmatpush1.msra.mxu0 0.0
    %849 = vmatprep.subr.mxu0 0.0
    %850 = vmatpush1.msra.mxu0 0.0
    %851 = vmatprep.subr.mxu0 0.0
    %852 = vmatpush1.msra.mxu0 0.0
    %853 = vmatprep.mubr.f32.mxu0 0.0
    %854 = vmatmul.mubr.f32.gmra.mrb[0].mxu0 %v784
    %v855 = vpop.f32.mrb[0].mxu0
    %v856 = vadd.f32 %v781, %v855
    %v857 = vpop.f32.mrb[0].mxu0
    %858 = vmatprep.mubr.f32.mxu0 0.0
    %859 = vmatmul.mubr.f32.gmra.mrb[0].mxu0 %v787
    %v860 = vpop.f32.mrb[0].mxu0
    %v861 = vadd.f32 %v781, %v860
    %v862 = vpop.f32.mrb[0].mxu0
    %863 = vdwg.mxu0
    %864 = vmatprep.subr.mxu0 0.0
    %865 = vmatpush1.msra.mxu0 %v770
    %866 = vmatprep.subr.mxu0 0.0
    %867 = vmatpush1.msra.mxu0 %v771
    %868 = vmatprep.subr.mxu0 0.0
    %869 = vmatpush1.msra.mxu0 %v772
    %870 = vmatprep.subr.mxu0 0.0
    %871 = vmatpush1.msra.mxu0 %v773
    %872 = vmatprep.subr.mxu0 0.0
    %873 = vmatpush1.msra.mxu0 0.0
    %874 = vmatprep.subr.mxu0 0.0
    %875 = vmatpush1.msra.mxu0 0.0
    %876 = vmatprep.subr.mxu0 0.0
    %877 = vmatpush1.msra.mxu0 0.0
    %878 = vmatprep.subr.mxu0 0.0
    %879 = vmatpush1.msra.mxu0 0.0
    %880 = vmatprep.subr.mxu0 0.0
    %881 = vmatpush1.msra.mxu0 0.0
    %882 = vmatprep.subr.mxu0 0.0
    %883 = vmatpush1.msra.mxu0 0.0
    %884 = vmatprep.subr.mxu0 0.0
    %885 = vmatpush1.msra.mxu0 0.0
    %886 = vmatprep.subr.mxu0 0.0
    %887 = vmatpush1.msra.mxu0 0.0
    %888 = vmatprep.subr.mxu0 0.0
    %889 = vmatpush1.msra.mxu0 0.0
    %890 = vmatprep.subr.mxu0 0.0
    %891 = vmatpush1.msra.mxu0 0.0
    %892 = vmatprep.subr.mxu0 0.0
    %893 = vmatpush1.msra.mxu0 0.0
    %894 = vmatprep.subr.mxu0 0.0
    %895 = vmatpush1.msra.mxu0 0.0
    %896 = vmatprep.subr.mxu0 0.0
    %897 = vmatpush1.msra.mxu0 0.0
    %898 = vmatprep.subr.mxu0 0.0
    %899 = vmatpush1.msra.mxu0 0.0
    %900 = vmatprep.subr.mxu0 0.0
    %901 = vmatpush1.msra.mxu0 0.0
    %902 = vmatprep.subr.mxu0 0.0
    %903 = vmatpush1.msra.mxu0 0.0
    %904 = vmatprep.subr.mxu0 0.0
    %905 = vmatpush1.msra.mxu0 0.0
    %906 = vmatprep.subr.mxu0 0.0
    %907 = vmatpush1.msra.mxu0 0.0
    %908 = vmatprep.subr.mxu0 0.0
    %909 = vmatpush1.msra.mxu0 0.0
    %910 = vmatprep.subr.mxu0 0.0
    %911 = vmatpush1.msra.mxu0 0.0
    %912 = vmatprep.subr.mxu0 0.0
    %913 = vmatpush1.msra.mxu0 0.0
    %914 = vmatprep.subr.mxu0 0.0
    %915 = vmatpush1.msra.mxu0 0.0
    %916 = vmatprep.subr.mxu0 0.0
    %917 = vmatpush1.msra.mxu0 0.0
    %918 = vmatprep.subr.mxu0 0.0
    %919 = vmatpush1.msra.mxu0 0.0
    %920 = vmatprep.subr.mxu0 0.0
    %921 = vmatpush1.msra.mxu0 0.0
    %922 = vmatprep.subr.mxu0 0.0
    %923 = vmatpush1.msra.mxu0 0.0
    %924 = vmatprep.subr.mxu0 0.0
    %925 = vmatpush1.msra.mxu0 0.0
    %926 = vmatprep.subr.mxu0 0.0
    %927 = vmatpush1.msra.mxu0 0.0
    %928 = vmatprep.mubr.f32.mxu0 0.0
    %929 = vmatmul.mubr.f32.gmra.mrb[0].mxu0 %v132
    %v930 = vpop.f32.mrb[0].mxu0
    %v931 = vadd.f32 0.0, %v930
    %v932 = vpop.f32.mrb[0].mxu0
    %933 = vdwg.mxu0
    %v934 = vadd.f32 %v856, %v931
    %v935 = vtanh.pop %v934
    %v937 = vsel %vm130, %v935, 0
    %939 = vmatprep.subr.mxu0 0.0
    %940 = vmatpush1.msra.mxu0 %v770
    %941 = vmatprep.subr.mxu0 0.0
    %942 = vmatpush1.msra.mxu0 %v771
    %943 = vmatprep.subr.mxu0 0.0
    %944 = vmatpush1.msra.mxu0 %v772
    %945 = vmatprep.subr.mxu0 0.0
    %946 = vmatpush1.msra.mxu0 %v773
    %947 = vmatprep.subr.mxu0 0.0
    %948 = vmatpush1.msra.mxu0 0.0
    %949 = vmatprep.subr.mxu0 0.0
    %950 = vmatpush1.msra.mxu0 0.0
    %951 = vmatprep.subr.mxu0 0.0
    %952 = vmatpush1.msra.mxu0 0.0
    %953 = vmatprep.subr.mxu0 0.0
    %954 = vmatpush1.msra.mxu0 0.0
    %955 = vmatprep.subr.mxu0 0.0
    %956 = vmatpush1.msra.mxu0 0.0
    %957 = vmatprep.subr.mxu0 0.0
    %958 = vmatpush1.msra.mxu0 0.0
    %959 = vmatprep.subr.mxu0 0.0
    %960 = vmatpush1.msra.mxu0 0.0
    %961 = vmatprep.subr.mxu0 0.0
    %962 = vmatpush1.msra.mxu0 0.0
    %963 = vmatprep.subr.mxu0 0.0
    %964 = vmatpush1.msra.mxu0 0.0
    %965 = vmatprep.subr.mxu0 0.0
    %966 = vmatpush1.msra.mxu0 0.0
    %967 = vmatprep.subr.mxu0 0.0
    %968 = vmatpush1.msra.mxu0 0.0
    %969 = vmatprep.subr.mxu0 0.0
    %970 = vmatpush1.msra.mxu0 0.0
    %971 = vmatprep.subr.mxu0 0.0
    %972 = vmatpush1.msra.mxu0 0.0
    %973 = vmatprep.subr.mxu0 0.0
    %974 = vmatpush1.msra.mxu0 0.0
    %975 = vmatprep.subr.mxu0 0.0
    %976 = vmatpush1.msra.mxu0 0.0
    %977 = vmatprep.subr.mxu0 0.0
    %978 = vmatpush1.msra.mxu0 0.0
    %979 = vmatprep.subr.mxu0 0.0
    %980 = vmatpush1.msra.mxu0 0.0
    %981 = vmatprep.subr.mxu0 0.0
    %982 = vmatpush1.msra.mxu0 0.0
    %983 = vmatprep.subr.mxu0 0.0
    %984 = vmatpush1.msra.mxu0 0.0
    %985 = vmatprep.subr.mxu0 0.0
    %986 = vmatpush1.msra.mxu0 0.0
    %987 = vmatprep.subr.mxu0 0.0
    %988 = vmatpush1.msra.mxu0 0.0
    %989 = vmatprep.subr.mxu0 0.0
    %990 = vmatpush1.msra.mxu0 0.0
    %991 = vmatprep.subr.mxu0 0.0
    %992 = vmatpush1.msra.mxu0 0.0
    %993 = vmatprep.subr.mxu0 0.0
    %994 = vmatpush1.msra.mxu0 0.0
    %995 = vmatprep.subr.mxu0 0.0
    %996 = vmatpush1.msra.mxu0 0.0
    %997 = vmatprep.subr.mxu0 0.0
    %998 = vmatpush1.msra.mxu0 0.0
    %999 = vmatprep.subr.mxu0 0.0
    %1000 = vmatpush1.msra.mxu0 0.0
    %1001 = vmatprep.subr.mxu0 0.0
    %1002 = vmatpush1.msra.mxu0 0.0
    %1003 = vmatprep.mubr.f32.mxu0 0.0
    %1004 = vmatmul.mubr.f32.gmra.mrb[0].mxu0 %v937
    %v1005 = vpop.f32.mrb[0].mxu0
    %v1006 = vadd.f32 0.0, %v1005
    %v1007 = vpop.f32.mrb[0].mxu0
    %1008 = vdwg.mxu0
    %v1010 = vrot.slane %v1006, 6
    %v1012 = vadd.f32 %v856, %v1010
    %v1013 = vtanh.pop %v1012
    %v1015 = vrot.slane %v1013, 2
    %v1016 = vsel %vm130, %v1015, 0
    %1018 = vmatprep.subr.mxu0 0.0
    %1019 = vmatpush1.msra.mxu0 %v770
    %1020 = vmatprep.subr.mxu0 0.0
    %1021 = vmatpush1.msra.mxu0 %v771
    %1022 = vmatprep.subr.mxu0 0.0
    %1023 = vmatpush1.msra.mxu0 %v772
    %1024 = vmatprep.subr.mxu0 0.0
    %1025 = vmatpush1.msra.mxu0 %v773
    %1026 = vmatprep.subr.mxu0 0.0
    %1027 = vmatpush1.msra.mxu0 0.0
    %1028 = vmatprep.subr.mxu0 0.0
    %1029 = vmatpush1.msra.mxu0 0.0
    %1030 = vmatprep.subr.mxu0 0.0
    %1031 = vmatpush1.msra.mxu0 0.0
    %1032 = vmatprep.subr.mxu0 0.0
    %1033 = vmatpush1.msra.mxu0 0.0
    %1034 = vmatprep.subr.mxu0 0.0
    %1035 = vmatpush1.msra.mxu0 0.0
    %1036 = vmatprep.subr.mxu0 0.0
    %1037 = vmatpush1.msra.mxu0 0.0
    %1038 = vmatprep.subr.mxu0 0.0
    %1039 = vmatpush1.msra.mxu0 0.0
    %1040 = vmatprep.subr.mxu0 0.0
    %1041 = vmatpush1.msra.mxu0 0.0
    %1042 = vmatprep.subr.mxu0 0.0
    %1043 = vmatpush1.msra.mxu0 0.0
    %1044 = vmatprep.subr.mxu0 0.0
    %1045 = vmatpush1.msra.mxu0 0.0
    %1046 = vmatprep.subr.mxu0 0.0
    %1047 = vmatpush1.msra.mxu0 0.0
    %1048 = vmatprep.subr.mxu0 0.0
    %1049 = vmatpush1.msra.mxu0 0.0
    %1050 = vmatprep.subr.mxu0 0.0
    %1051 = vmatpush1.msra.mxu0 0.0
    %1052 = vmatprep.subr.mxu0 0.0
    %1053 = vmatpush1.msra.mxu0 0.0
    %1054 = vmatprep.subr.mxu0 0.0
    %1055 = vmatpush1.msra.mxu0 0.0
    %1056 = vmatprep.subr.mxu0 0.0
    %1057 = vmatpush1.msra.mxu0 0.0
    %1058 = vmatprep.subr.mxu0 0.0
    %1059 = vmatpush1.msra.mxu0 0.0
    %1060 = vmatprep.subr.mxu0 0.0
    %1061 = vmatpush1.msra.mxu0 0.0
    %1062 = vmatprep.subr.mxu0 0.0
    %1063 = vmatpush1.msra.mxu0 0.0
    %1064 = vmatprep.subr.mxu0 0.0
    %1065 = vmatpush1.msra.mxu0 0.0
    %1066 = vmatprep.subr.mxu0 0.0
    %1067 = vmatpush1.msra.mxu0 0.0
    %1068 = vmatprep.subr.mxu0 0.0
    %1069 = vmatpush1.msra.mxu0 0.0
    %1070 = vmatprep.subr.mxu0 0.0
    %1071 = vmatpush1.msra.mxu0 0.0
    %1072 = vmatprep.subr.mxu0 0.0
    %1073 = vmatpush1.msra.mxu0 0.0
    %1074 = vmatprep.subr.mxu0 0.0
    %1075 = vmatpush1.msra.mxu0 0.0
    %1076 = vmatprep.subr.mxu0 0.0
    %1077 = vmatpush1.msra.mxu0 0.0
    %1078 = vmatprep.subr.mxu0 0.0
    %1079 = vmatpush1.msra.mxu0 0.0
    %1080 = vmatprep.subr.mxu0 0.0
    %1081 = vmatpush1.msra.mxu0 0.0
    %1082 = vmatprep.mubr.f32.mxu0 0.0
    %1083 = vmatmul.mubr.f32.gmra.mrb[0].mxu0 %v1016
    %v1084 = vpop.f32.mrb[0].mxu0
    %v1085 = vadd.f32 0.0, %v1084
    %v1086 = vpop.f32.mrb[0].mxu0
    %1087 = vdwg.mxu0
    %v1089 = vrot.slane %v1085, 4
    %v1091 = vadd.f32 %v856, %v1089
    %v1092 = vtanh.pop %v1091
    %v1094 = vrot.slane %v1092, 4
    %v1095 = vsel %vm130, %v1094, 0
    %1097 = vmatprep.subr.mxu0 0.0
    %1098 = vmatpush1.msra.mxu0 %v770
    %1099 = vmatprep.subr.mxu0 0.0
    %1100 = vmatpush1.msra.mxu0 %v771
    %1101 = vmatprep.subr.mxu0 0.0
    %1102 = vmatpush1.msra.mxu0 %v772
    %1103 = vmatprep.subr.mxu0 0.0
    %1104 = vmatpush1.msra.mxu0 %v773
    %1105 = vmatprep.subr.mxu0 0.0
    %1106 = vmatpush1.msra.mxu0 0.0
    %1107 = vmatprep.subr.mxu0 0.0
    %1108 = vmatpush1.msra.mxu0 0.0
    %1109 = vmatprep.subr.mxu0 0.0
    %1110 = vmatpush1.msra.mxu0 0.0
    %1111 = vmatprep.subr.mxu0 0.0
    %1112 = vmatpush1.msra.mxu0 0.0
    %1113 = vmatprep.subr.mxu0 0.0
    %1114 = vmatpush1.msra.mxu0 0.0
    %1115 = vmatprep.subr.mxu0 0.0
    %1116 = vmatpush1.msra.mxu0 0.0
    %1117 = vmatprep.subr.mxu0 0.0
    %1118 = vmatpush1.msra.mxu0 0.0
    %1119 = vmatprep.subr.mxu0 0.0
    %1120 = vmatpush1.msra.mxu0 0.0
    %1121 = vmatprep.subr.mxu0 0.0
    %1122 = vmatpush1.msra.mxu0 0.0
    %1123 = vmatprep.subr.mxu0 0.0
    %1124 = vmatpush1.msra.mxu0 0.0
    %1125 = vmatprep.subr.mxu0 0.0
    %1126 = vmatpush1.msra.mxu0 0.0
    %1127 = vmatprep.subr.mxu0 0.0
    %1128 = vmatpush1.msra.mxu0 0.0
    %1129 = vmatprep.subr.mxu0 0.0
    %1130 = vmatpush1.msra.mxu0 0.0
    %1131 = vmatprep.subr.mxu0 0.0
    %1132 = vmatpush1.msra.mxu0 0.0
    %1133 = vmatprep.subr.mxu0 0.0
    %1134 = vmatpush1.msra.mxu0 0.0
    %1135 = vmatprep.subr.mxu0 0.0
    %1136 = vmatpush1.msra.mxu0 0.0
    %1137 = vmatprep.subr.mxu0 0.0
    %1138 = vmatpush1.msra.mxu0 0.0
    %1139 = vmatprep.subr.mxu0 0.0
    %1140 = vmatpush1.msra.mxu0 0.0
    %1141 = vmatprep.subr.mxu0 0.0
    %1142 = vmatpush1.msra.mxu0 0.0
    %1143 = vmatprep.subr.mxu0 0.0
    %1144 = vmatpush1.msra.mxu0 0.0
    %1145 = vmatprep.subr.mxu0 0.0
    %1146 = vmatpush1.msra.mxu0 0.0
    %1147 = vmatprep.subr.mxu0 0.0
    %1148 = vmatpush1.msra.mxu0 0.0
    %1149 = vmatprep.subr.mxu0 0.0
    %1150 = vmatpush1.msra.mxu0 0.0
    %1151 = vmatprep.subr.mxu0 0.0
    %1152 = vmatpush1.msra.mxu0 0.0
    %1153 = vmatprep.subr.mxu0 0.0
    %1154 = vmatpush1.msra.mxu0 0.0
    %1155 = vmatprep.subr.mxu0 0.0
    %1156 = vmatpush1.msra.mxu0 0.0
    %1157 = vmatprep.subr.mxu0 0.0
    %1158 = vmatpush1.msra.mxu0 0.0
    %1159 = vmatprep.subr.mxu0 0.0
    %1160 = vmatpush1.msra.mxu0 0.0
    %1161 = vmatprep.mubr.f32.mxu0 0.0
    %1162 = vmatmul.mubr.f32.gmra.mrb[0].mxu0 %v1095
    %v1163 = vpop.f32.mrb[0].mxu0
    %v1164 = vadd.f32 0.0, %v1163
    %v1165 = vpop.f32.mrb[0].mxu0
    %1166 = vdwg.mxu0
    %v1168 = vrot.slane %v1164, 2
    %v1170 = vadd.f32 %v856, %v1168
    %v1171 = vtanh.pop %v1170
    %v1173 = vrot.slane %v1171, 6
    %v1174 = vsel %vm130, %v1173, 0
    %1176 = vmatprep.subr.mxu0 0.0
    %1177 = vmatpush1.msra.mxu0 %v770
    %1178 = vmatprep.subr.mxu0 0.0
    %1179 = vmatpush1.msra.mxu0 %v771
    %1180 = vmatprep.subr.mxu0 0.0
    %1181 = vmatpush1.msra.mxu0 %v772
    %1182 = vmatprep.subr.mxu0 0.0
    %1183 = vmatpush1.msra.mxu0 %v773
    %1184 = vmatprep.subr.mxu0 0.0
    %1185 = vmatpush1.msra.mxu0 0.0
    %1186 = vmatprep.subr.mxu0 0.0
    %1187 = vmatpush1.msra.mxu0 0.0
    %1188 = vmatprep.subr.mxu0 0.0
    %1189 = vmatpush1.msra.mxu0 0.0
    %1190 = vmatprep.subr.mxu0 0.0
    %1191 = vmatpush1.msra.mxu0 0.0
    %1192 = vmatprep.subr.mxu0 0.0
    %1193 = vmatpush1.msra.mxu0 0.0
    %1194 = vmatprep.subr.mxu0 0.0
    %1195 = vmatpush1.msra.mxu0 0.0
    %1196 = vmatprep.subr.mxu0 0.0
    %1197 = vmatpush1.msra.mxu0 0.0
    %1198 = vmatprep.subr.mxu0 0.0
    %1199 = vmatpush1.msra.mxu0 0.0
    %1200 = vmatprep.subr.mxu0 0.0
    %1201 = vmatpush1.msra.mxu0 0.0
    %1202 = vmatprep.subr.mxu0 0.0
    %1203 = vmatpush1.msra.mxu0 0.0
    %1204 = vmatprep.subr.mxu0 0.0
    %1205 = vmatpush1.msra.mxu0 0.0
    %1206 = vmatprep.subr.mxu0 0.0
    %1207 = vmatpush1.msra.mxu0 0.0
    %1208 = vmatprep.subr.mxu0 0.0
    %1209 = vmatpush1.msra.mxu0 0.0
    %1210 = vmatprep.subr.mxu0 0.0
    %1211 = vmatpush1.msra.mxu0 0.0
    %1212 = vmatprep.subr.mxu0 0.0
    %1213 = vmatpush1.msra.mxu0 0.0
    %1214 = vmatprep.subr.mxu0 0.0
    %1215 = vmatpush1.msra.mxu0 0.0
    %1216 = vmatprep.subr.mxu0 0.0
    %1217 = vmatpush1.msra.mxu0 0.0
    %1218 = vmatprep.subr.mxu0 0.0
    %1219 = vmatpush1.msra.mxu0 0.0
    %1220 = vmatprep.subr.mxu0 0.0
    %1221 = vmatpush1.msra.mxu0 0.0
    %1222 = vmatprep.subr.mxu0 0.0
    %1223 = vmatpush1.msra.mxu0 0.0
    %1224 = vmatprep.subr.mxu0 0.0
    %1225 = vmatpush1.msra.mxu0 0.0
    %1226 = vmatprep.subr.mxu0 0.0
    %1227 = vmatpush1.msra.mxu0 0.0
    %1228 = vmatprep.subr.mxu0 0.0
    %1229 = vmatpush1.msra.mxu0 0.0
    %1230 = vmatprep.subr.mxu0 0.0
    %1231 = vmatpush1.msra.mxu0 0.0
    %1232 = vmatprep.subr.mxu0 0.0
    %1233 = vmatpush1.msra.mxu0 0.0
    %1234 = vmatprep.subr.mxu0 0.0
    %1235 = vmatpush1.msra.mxu0 0.0
    %1236 = vmatprep.subr.mxu0 0.0
    %1237 = vmatpush1.msra.mxu0 0.0
    %1238 = vmatprep.subr.mxu0 0.0
    %1239 = vmatpush1.msra.mxu0 0.0
    %1240 = vmatprep.mubr.f32.mxu0 0.0
    %1241 = vmatmul.mubr.f32.gmra.mrb[0].mxu0 %v1174
    %v1242 = vpop.f32.mrb[0].mxu0
    %v1243 = vadd.f32 0.0, %v1242
    %v1244 = vpop.f32.mrb[0].mxu0
    %1245 = vdwg.mxu0
    %v1246 = vadd.f32 %v861, %v1243
    %v1247 = vtanh.pop %v1246
    %v1249 = vsel %vm130, %v1247, 0
    %1251 = vmatprep.subr.mxu0 0.0
    %1252 = vmatpush1.msra.mxu0 %v770
    %1253 = vmatprep.subr.mxu0 0.0
    %1254 = vmatpush1.msra.mxu0 %v771
    %1255 = vmatprep.subr.mxu0 0.0
    %1256 = vmatpush1.msra.mxu0 %v772
    %1257 = vmatprep.subr.mxu0 0.0
    %1258 = vmatpush1.msra.mxu0 %v773
    %1259 = vmatprep.subr.mxu0 0.0
    %1260 = vmatpush1.msra.mxu0 0.0
    %1261 = vmatprep.subr.mxu0 0.0
    %1262 = vmatpush1.msra.mxu0 0.0
    %1263 = vmatprep.subr.mxu0 0.0
    %1264 = vmatpush1.msra.mxu0 0.0
    %1265 = vmatprep.subr.mxu0 0.0
    %1266 = vmatpush1.msra.mxu0 0.0
    %1267 = vmatprep.subr.mxu0 0.0
    %1268 = vmatpush1.msra.mxu0 0.0
    %1269 = vmatprep.subr.mxu0 0.0
    %1270 = vmatpush1.msra.mxu0 0.0
    %1271 = vmatprep.subr.mxu0 0.0
    %1272 = vmatpush1.msra.mxu0 0.0
    %1273 = vmatprep.subr.mxu0 0.0
    %1274 = vmatpush1.msra.mxu0 0.0
    %1275 = vmatprep.subr.mxu0 0.0
    %1276 = vmatpush1.msra.mxu0 0.0
    %1277 = vmatprep.subr.mxu0 0.0
    %1278 = vmatpush1.msra.mxu0 0.0
    %1279 = vmatprep.subr.mxu0 0.0
    %1280 = vmatpush1.msra.mxu0 0.0
    %1281 = vmatprep.subr.mxu0 0.0
    %1282 = vmatpush1.msra.mxu0 0.0
    %1283 = vmatprep.subr.mxu0 0.0
    %1284 = vmatpush1.msra.mxu0 0.0
    %1285 = vmatprep.subr.mxu0 0.0
    %1286 = vmatpush1.msra.mxu0 0.0
    %1287 = vmatprep.subr.mxu0 0.0
    %1288 = vmatpush1.msra.mxu0 0.0
    %1289 = vmatprep.subr.mxu0 0.0
    %1290 = vmatpush1.msra.mxu0 0.0
    %1291 = vmatprep.subr.mxu0 0.0
    %1292 = vmatpush1.msra.mxu0 0.0
    %1293 = vmatprep.subr.mxu0 0.0
    %1294 = vmatpush1.msra.mxu0 0.0
    %1295 = vmatprep.subr.mxu0 0.0
    %1296 = vmatpush1.msra.mxu0 0.0
    %1297 = vmatprep.subr.mxu0 0.0
    %1298 = vmatpush1.msra.mxu0 0.0
    %1299 = vmatprep.subr.mxu0 0.0
    %1300 = vmatpush1.msra.mxu0 0.0
    %1301 = vmatprep.subr.mxu0 0.0
    %1302 = vmatpush1.msra.mxu0 0.0
    %1303 = vmatprep.subr.mxu0 0.0
    %1304 = vmatpush1.msra.mxu0 0.0
    %1305 = vmatprep.subr.mxu0 0.0
    %1306 = vmatpush1.msra.mxu0 0.0
    %1307 = vmatprep.subr.mxu0 0.0
    %1308 = vmatpush1.msra.mxu0 0.0
    %1309 = vmatprep.subr.mxu0 0.0
    %1310 = vmatpush1.msra.mxu0 0.0
    %1311 = vmatprep.subr.mxu0 0.0
    %1312 = vmatpush1.msra.mxu0 0.0
    %1313 = vmatprep.subr.mxu0 0.0
    %1314 = vmatpush1.msra.mxu0 0.0
    %1315 = vmatprep.mubr.f32.mxu0 0.0
    %1316 = vmatmul.mubr.f32.gmra.mrb[0].mxu0 %v1249
    %v1317 = vpop.f32.mrb[0].mxu0
    %v1318 = vadd.f32 0.0, %v1317
    %v1319 = vpop.f32.mrb[0].mxu0
    %1320 = vdwg.mxu0
    %v1322 = vrot.slane %v1318, 6
    %v1324 = vadd.f32 %v861, %v1322
    %v1325 = vtanh.pop %v1324
    %v1327 = vrot.slane %v1325, 2
    %v1328 = vsel %vm130, %v1327, 0
    %1330 = vmatprep.subr.mxu0 0.0
    %1331 = vmatpush1.msra.mxu0 %v770
    %1332 = vmatprep.subr.mxu0 0.0
    %1333 = vmatpush1.msra.mxu0 %v771
    %1334 = vmatprep.subr.mxu0 0.0
    %1335 = vmatpush1.msra.mxu0 %v772
    %1336 = vmatprep.subr.mxu0 0.0
    %1337 = vmatpush1.msra.mxu0 %v773
    %1338 = vmatprep.subr.mxu0 0.0
    %1339 = vmatpush1.msra.mxu0 0.0
    %1340 = vmatprep.subr.mxu0 0.0
    %1341 = vmatpush1.msra.mxu0 0.0
    %1342 = vmatprep.subr.mxu0 0.0
    %1343 = vmatpush1.msra.mxu0 0.0
    %1344 = vmatprep.subr.mxu0 0.0
    %1345 = vmatpush1.msra.mxu0 0.0
    %1346 = vmatprep.subr.mxu0 0.0
    %1347 = vmatpush1.msra.mxu0 0.0
    %1348 = vmatprep.subr.mxu0 0.0
    %1349 = vmatpush1.msra.mxu0 0.0
    %1350 = vmatprep.subr.mxu0 0.0
    %1351 = vmatpush1.msra.mxu0 0.0
    %1352 = vmatprep.subr.mxu0 0.0
    %1353 = vmatpush1.msra.mxu0 0.0
    %1354 = vmatprep.subr.mxu0 0.0
    %1355 = vmatpush1.msra.mxu0 0.0
    %1356 = vmatprep.subr.mxu0 0.0
    %1357 = vmatpush1.msra.mxu0 0.0
    %1358 = vmatprep.subr.mxu0 0.0
    %1359 = vmatpush1.msra.mxu0 0.0
    %1360 = vmatprep.subr.mxu0 0.0
    %1361 = vmatpush1.msra.mxu0 0.0
    %1362 = vmatprep.subr.mxu0 0.0
    %1363 = vmatpush1.msra.mxu0 0.0
    %1364 = vmatprep.subr.mxu0 0.0
    %1365 = vmatpush1.msra.mxu0 0.0
    %1366 = vmatprep.subr.mxu0 0.0
    %1367 = vmatpush1.msra.mxu0 0.0
    %1368 = vmatprep.subr.mxu0 0.0
    %1369 = vmatpush1.msra.mxu0 0.0
    %1370 = vmatprep.subr.mxu0 0.0
    %1371 = vmatpush1.msra.mxu0 0.0
    %1372 = vmatprep.subr.mxu0 0.0
    %1373 = vmatpush1.msra.mxu0 0.0
    %1374 = vmatprep.subr.mxu0 0.0
    %1375 = vmatpush1.msra.mxu0 0.0
    %1376 = vmatprep.subr.mxu0 0.0
    %1377 = vmatpush1.msra.mxu0 0.0
    %1378 = vmatprep.subr.mxu0 0.0
    %1379 = vmatpush1.msra.mxu0 0.0
    %1380 = vmatprep.subr.mxu0 0.0
    %1381 = vmatpush1.msra.mxu0 0.0
    %1382 = vmatprep.subr.mxu0 0.0
    %1383 = vmatpush1.msra.mxu0 0.0
    %1384 = vmatprep.subr.mxu0 0.0
    %1385 = vmatpush1.msra.mxu0 0.0
    %1386 = vmatprep.subr.mxu0 0.0
    %1387 = vmatpush1.msra.mxu0 0.0
    %1388 = vmatprep.subr.mxu0 0.0
    %1389 = vmatpush1.msra.mxu0 0.0
    %1390 = vmatprep.subr.mxu0 0.0
    %1391 = vmatpush1.msra.mxu0 0.0
    %1392 = vmatprep.subr.mxu0 0.0
    %1393 = vmatpush1.msra.mxu0 0.0
    %1394 = vmatprep.mubr.f32.mxu0 0.0
    %1395 = vmatmul.mubr.f32.gmra.mrb[0].mxu0 %v1328
    %v1396 = vpop.f32.mrb[0].mxu0
    %v1397 = vadd.f32 0.0, %v1396
    %v1398 = vpop.f32.mrb[0].mxu0
    %1399 = vdwg.mxu0
    %v1401 = vrot.slane %v1397, 4
    %v1403 = vadd.f32 %v861, %v1401
    %v1404 = vtanh.pop %v1403
    %v1406 = vrot.slane %v1404, 4
    %v1407 = vsel %vm130, %v1406, 0
    %1409 = vmatprep.subr.mxu0 0.0
    %1410 = vmatpush1.msra.mxu0 %v770
    %1411 = vmatprep.subr.mxu0 0.0
    %1412 = vmatpush1.msra.mxu0 %v771
    %1413 = vmatprep.subr.mxu0 0.0
    %1414 = vmatpush1.msra.mxu0 %v772
    %1415 = vmatprep.subr.mxu0 0.0
    %1416 = vmatpush1.msra.mxu0 %v773
    %1417 = vmatprep.subr.mxu0 0.0
    %1418 = vmatpush1.msra.mxu0 0.0
    %1419 = vmatprep.subr.mxu0 0.0
    %1420 = vmatpush1.msra.mxu0 0.0
    %1421 = vmatprep.subr.mxu0 0.0
    %1422 = vmatpush1.msra.mxu0 0.0
    %1423 = vmatprep.subr.mxu0 0.0
    %1424 = vmatpush1.msra.mxu0 0.0
    %1425 = vmatprep.subr.mxu0 0.0
    %1426 = vmatpush1.msra.mxu0 0.0
    %1427 = vmatprep.subr.mxu0 0.0
    %1428 = vmatpush1.msra.mxu0 0.0
    %1429 = vmatprep.subr.mxu0 0.0
    %1430 = vmatpush1.msra.mxu0 0.0
    %1431 = vmatprep.subr.mxu0 0.0
    %1432 = vmatpush1.msra.mxu0 0.0
    %1433 = vmatprep.subr.mxu0 0.0
    %1434 = vmatpush1.msra.mxu0 0.0
    %1435 = vmatprep.subr.mxu0 0.0
    %1436 = vmatpush1.msra.mxu0 0.0
    %1437 = vmatprep.subr.mxu0 0.0
    %1438 = vmatpush1.msra.mxu0 0.0
    %1439 = vmatprep.subr.mxu0 0.0
    %1440 = vmatpush1.msra.mxu0 0.0
    %1441 = vmatprep.subr.mxu0 0.0
    %1442 = vmatpush1.msra.mxu0 0.0
    %1443 = vmatprep.subr.mxu0 0.0
    %1444 = vmatpush1.msra.mxu0 0.0
    %1445 = vmatprep.subr.mxu0 0.0
    %1446 = vmatpush1.msra.mxu0 0.0
    %1447 = vmatprep.subr.mxu0 0.0
    %1448 = vmatpush1.msra.mxu0 0.0
    %1449 = vmatprep.subr.mxu0 0.0
    %1450 = vmatpush1.msra.mxu0 0.0
    %1451 = vmatprep.subr.mxu0 0.0
    %1452 = vmatpush1.msra.mxu0 0.0
    %1453 = vmatprep.subr.mxu0 0.0
    %1454 = vmatpush1.msra.mxu0 0.0
    %1455 = vmatprep.subr.mxu0 0.0
    %1456 = vmatpush1.msra.mxu0 0.0
    %1457 = vmatprep.subr.mxu0 0.0
    %1458 = vmatpush1.msra.mxu0 0.0
    %1459 = vmatprep.subr.mxu0 0.0
    %1460 = vmatpush1.msra.mxu0 0.0
    %1461 = vmatprep.subr.mxu0 0.0
    %1462 = vmatpush1.msra.mxu0 0.0
    %1463 = vmatprep.subr.mxu0 0.0
    %1464 = vmatpush1.msra.mxu0 0.0
    %1465 = vmatprep.subr.mxu0 0.0
    %1466 = vmatpush1.msra.mxu0 0.0
    %1467 = vmatprep.subr.mxu0 0.0
    %1468 = vmatpush1.msra.mxu0 0.0
    %1469 = vmatprep.subr.mxu0 0.0
    %1470 = vmatpush1.msra.mxu0 0.0
    %1471 = vmatprep.subr.mxu0 0.0
    %1472 = vmatpush1.msra.mxu0 0.0
    %1473 = vmatprep.mubr.f32.mxu0 0.0
    %1474 = vmatmul.mubr.f32.gmra.mrb[0].mxu0 %v1407
    %v1475 = vpop.f32.mrb[0].mxu0
    %v1476 = vadd.f32 0.0, %v1475
    %v1477 = vpop.f32.mrb[0].mxu0
    %1478 = vdwg.mxu0
    %v1480 = vrot.slane %v1476, 2
    %v1482 = vadd.f32 %v861, %v1480
    %v1483 = vtanh.pop %v1482
    %v1484 = vld [vmem:[%s7] sm:$0xff]
    %v1485 = vld [vmem:[%s7 + $0x8] sm:$0xff]
    %v1486 = vld [vmem:[%s7 + $0x10] sm:$0xff]
    %v1487 = vld [vmem:[%s7 + $0x18] sm:$0xff]
    %v1488 = vld [vmem:[%s8] sm:$0x1]
    %v1490 = vlaneseq
    %v1491 = vshrl.u32 %v1490, 7
    %v1492 = vsub.s32 0, %v1491
    %v1493 = vrot.slane %v1488, %v1492
    %v1496 = vrot.slane %v1483, 6
    %v1497 = vsel %vm130, %v1496, 0
    %1499 = vmatprep.subr.mxu0 0.0
    %1500 = vmatpush1.msra.mxu0 %v1484
    %1501 = vmatprep.subr.mxu0 0.0
    %1502 = vmatpush1.msra.mxu0 %v1485
    %1503 = vmatprep.subr.mxu0 0.0
    %1504 = vmatpush1.msra.mxu0 %v1486
    %1505 = vmatprep.subr.mxu0 0.0
    %1506 = vmatpush1.msra.mxu0 %v1487
    %1507 = vmatprep.subr.mxu0 0.0
    %1508 = vmatpush1.msra.mxu0 0.0
    %1509 = vmatprep.subr.mxu0 0.0
    %1510 = vmatpush1.msra.mxu0 0.0
    %1511 = vmatprep.subr.mxu0 0.0
    %1512 = vmatpush1.msra.mxu0 0.0
    %1513 = vmatprep.subr.mxu0 0.0
    %1514 = vmatpush1.msra.mxu0 0.0
    %1515 = vmatprep.subr.mxu0 0.0
    %1516 = vmatpush1.msra.mxu0 0.0
    %1517 = vmatprep.subr.mxu0 0.0
    %1518 = vmatpush1.msra.mxu0 0.0
    %1519 = vmatprep.subr.mxu0 0.0
    %1520 = vmatpush1.msra.mxu0 0.0
    %1521 = vmatprep.subr.mxu0 0.0
    %1522 = vmatpush1.msra.mxu0 0.0
    %1523 = vmatprep.subr.mxu0 0.0
    %1524 = vmatpush1.msra.mxu0 0.0
    %1525 = vmatprep.subr.mxu0 0.0
    %1526 = vmatpush1.msra.mxu0 0.0
    %1527 = vmatprep.subr.mxu0 0.0
    %1528 = vmatpush1.msra.mxu0 0.0
    %1529 = vmatprep.subr.mxu0 0.0
    %1530 = vmatpush1.msra.mxu0 0.0
    %1531 = vmatprep.subr.mxu0 0.0
    %1532 = vmatpush1.msra.mxu0 0.0
    %1533 = vmatprep.subr.mxu0 0.0
    %1534 = vmatpush1.msra.mxu0 0.0
    %1535 = vmatprep.subr.mxu0 0.0
    %1536 = vmatpush1.msra.mxu0 0.0
    %1537 = vmatprep.subr.mxu0 0.0
    %1538 = vmatpush1.msra.mxu0 0.0
    %1539 = vmatprep.subr.mxu0 0.0
    %1540 = vmatpush1.msra.mxu0 0.0
    %1541 = vmatprep.subr.mxu0 0.0
    %1542 = vmatpush1.msra.mxu0 0.0
    %1543 = vmatprep.subr.mxu0 0.0
    %1544 = vmatpush1.msra.mxu0 0.0
    %1545 = vmatprep.subr.mxu0 0.0
    %1546 = vmatpush1.msra.mxu0 0.0
    %1547 = vmatprep.subr.mxu0 0.0
    %1548 = vmatpush1.msra.mxu0 0.0
    %1549 = vmatprep.subr.mxu0 0.0
    %1550 = vmatpush1.msra.mxu0 0.0
    %1551 = vmatprep.subr.mxu0 0.0
    %1552 = vmatpush1.msra.mxu0 0.0
    %1553 = vmatprep.subr.mxu0 0.0
    %1554 = vmatpush1.msra.mxu0 0.0
    %1555 = vmatprep.subr.mxu0 0.0
    %1556 = vmatpush1.msra.mxu0 0.0
    %1557 = vmatprep.subr.mxu0 0.0
    %1558 = vmatpush1.msra.mxu0 0.0
    %1559 = vmatprep.subr.mxu0 0.0
    %1560 = vmatpush1.msra.mxu0 0.0
    %1561 = vmatprep.subr.mxu0 0.0
    %1562 = vmatpush1.msra.mxu0 0.0
    %1563 = vmatprep.mubr.f32.mxu0 0.0
    %1564 = vmatmul.mubr.f32.gmra.mrb[0].mxu0 %v1497
    %v1565 = vpop.f32.mrb[0].mxu0
    %v1566 = vadd.f32 %v1493, %v1565
    %v1567 = vpop.f32.mrb[0].mxu0
    %1568 = vdwg.mxu0
    %vm1569 = vcmask 74752
    %1570 = vst.msk [vmem:[#allocation3] sm:$0x3] %vm1569, %v1566
    // Predicated region
    $region38: #{vanilla_rnn_forward.1} parent=1 // pred_check
      _
    $region39: #{vanilla_rnn_forward.1} parent=1 // pred_check_branch
      %1572 = sbr.rel (0) target = $region41
    $region40: #{vanilla_rnn_forward.1} parent=1 // pred_region
      %s1574 = ssub.s32 32, 32
      %1575 = vsyncadd [#allocation4], %s1574
      %s1577 = sshll.u32 [#allocation3], 4
      %s1578 = int_to_ptr.vmem [resolvable:$true] %s1577
      %1580 = dma.vmem_to_hbm [thread:$0]  %s1578, 32, %s9, [#allocation4]
    $region41: #{vanilla_rnn_forward.1} parent=1 // pred_fallthru
      _
    // Predicated region
    $region42: #{vanilla_rnn_forward.1} parent=1 // pred_check
      _
    $region43: #{vanilla_rnn_forward.1} parent=1 // pred_check_branch
      %1582 = sbr.rel (0) target = $region45
    $region44: #{vanilla_rnn_forward.1} parent=1 // pred_region
      %1583 = dma.done [#allocation4], 32
    $region45: #{vanilla_rnn_forward.1} parent=1 // pred_fallthru
      _
    %1584 = vsyncpa [#allocation4], 1

</llo_original>
